<compile_context>
chip_gen: v7x
topology: tpu7x:2x2x1
jax: 0.10.0
libtpu: 0.0.40
codegen_flags: <defaults>
</compile_context>

<pallas_src>
import jax
import jax.numpy as jnp
from jax.experimental import pallas as pl
from jax.experimental.pallas import tpu as pltpu


def _round_up(n, m):
    return ((n + m - 1) // m) * m


def lstm_decoder_kernel(gate_ref, tgt_ref, mask_ref, wh_ref, h0_ref, c0_ref,
                        wout_ref, bout_ref, loss_ref):
    """One batch shard: all T timesteps in a single unrolled in-kernel loop.

    gate_ref : (T, Bs, 4H) f32   precomputed x@Wx + ccg_t@Wc + (b_ih+b_hh)
    tgt_ref  : (T, Bs, 1)  i32   teacher-forcing targets
    mask_ref : (T, Bs, 1)  f32   atom_mask
    wh_ref   : (H, 4H)     bf16  recurrent weight (transposed, gate order ifgo)
    h0/c0    : (Bs, H)     f32
    wout_ref : (H, Np)     bf16  output projection (n_tag padded to Np)
    bout_ref : (1, Np)     f32   output bias (-1e30 in padded columns)
    loss_ref : (1, 1, 1)   f32   per-shard summed masked cross-entropy
    """
    T = gate_ref.shape[0]
    Bs = gate_ref.shape[1]
    H = h0_ref.shape[1]
    Np = wout_ref.shape[1]

    # Loop-invariant loads / constants hoisted out of the time loop.
    wh = wh_ref[...]                                            # (H, 4H) bf16
    wout = wout_ref[...]                                        # (H, Np) bf16
    bout = bout_ref[...]                                        # (1, Np) f32
    lane_ids = jax.lax.broadcasted_iota(jnp.int32, (Bs, Np), 1)

    def step(t, carry):
        h, c, loss = carry                                      # f32 carries
        # Only the recurrent matmul remains per step (bf16 MXU operands,
        # f32 accumulation; gate/cell elementwise math stays f32).
        gates = gate_ref[t] + jnp.dot(h.astype(jnp.bfloat16), wh,
                                      preferred_element_type=jnp.float32)
        i_g = jax.nn.sigmoid(gates[:, 0 * H:1 * H])
        f_g = jax.nn.sigmoid(gates[:, 1 * H:2 * H])
        g_g = jnp.tanh(gates[:, 2 * H:3 * H])
        o_g = jax.nn.sigmoid(gates[:, 3 * H:4 * H])
        c_new = f_g * c + i_g * g_g
        h_new = o_g * jnp.tanh(c_new)

        # Output projection + numerically-stable masked cross-entropy (sum).
        logits = jnp.dot(h_new.astype(jnp.bfloat16), wout,
                         preferred_element_type=jnp.float32) + bout   # (Bs,Np)
        m = jnp.max(logits, axis=1, keepdims=True)
        lse = m + jnp.log(jnp.sum(jnp.exp(logits - m), axis=1, keepdims=True))
        tgt_logit = jnp.sum(jnp.where(lane_ids == tgt_ref[t], logits, 0.0),
                            axis=1, keepdims=True)                    # (Bs,1)
        step_loss = jnp.sum((lse - tgt_logit) * mask_ref[t], keepdims=True)
        return h_new, c_new, loss + step_loss

    init = (h0_ref[...], c0_ref[...], jnp.zeros((1, 1), jnp.float32))
    _, _, loss = jax.lax.fori_loop(0, T, step, init, unroll=True)
    loss_ref[0] = loss


def lstm_decoder_loss(x, ccg_seq, targets, mask, wx, wc, wh, b, h0, c0,
                      wout, bout, num_batch_shards=1):
    """Training-path forward of LSTMDecoder: masked mean cross-entropy.

    x        : (B, x_dims) f32
    ccg_seq  : (T, B, ccg_dims) f32  teacher-forced input embeddings
    targets  : (T, B) int           atom_truth (time-major)
    mask     : (T, B) f32           atom_mask  (time-major)
    weights stored transposed: wx (x_dims,4H), wc (ccg,4H), wh (H,4H),
    b (1,4H)=b_ih+b_hh, wout (H,n_tag), bout (1,n_tag); gate order i,f,g,o.
    """
    T, B, _ = ccg_seq.shape
    H = h0.shape[1]
    n_tag = wout.shape[1]
    G = int(num_batch_shards)

    # ---- hoisted, time-invariant / batched precompute (one-time XLA ops) ----
    gate_const = jnp.dot(x, wx) + b                                   # (B, 4H)
    gate_in = jnp.einsum('tbc,cg->tbg', ccg_seq, wc) + gate_const[None]  # (T,B,4H)

    # ---- pad batch to a multiple of 8 per shard; n_tag to lane width 128 ----
    Bp = _round_up(B, 8 * G)
    Np = _round_up(n_tag, 128)
    pb, pn = Bp - B, Np - n_tag
    gate_in = jnp.pad(gate_in, ((0, 0), (0, pb), (0, 0)))
    tgt_p = jnp.pad(targets.astype(jnp.int32), ((0, 0), (0, pb)))[..., None]
    mask_p = jnp.pad(mask.astype(jnp.float32), ((0, 0), (0, pb)))[..., None]
    h0_p = jnp.pad(h0, ((0, pb), (0, 0)))
    c0_p = jnp.pad(c0, ((0, pb), (0, 0)))
    wout_p = jnp.pad(wout, ((0, 0), (0, pn))).astype(jnp.bfloat16)
    bout_p = jnp.pad(bout, ((0, 0), (0, pn)), constant_values=-1e30)
    wh_bf = wh.astype(jnp.bfloat16)

    Bs = Bp // G                                                       # rows/shard

    loss_parts = pl.pallas_call(
        lstm_decoder_kernel,
        out_shape=jax.ShapeDtypeStruct((G, 1, 1), jnp.float32),
        grid_spec=pltpu.PrefetchScalarGridSpec(
            num_scalar_prefetch=0,
            grid=(G,),                                        # batch shards
            in_specs=[
                pl.BlockSpec((T, Bs, 4 * H), lambda g: (0, g, 0)),   # gate_in
                pl.BlockSpec((T, Bs, 1), lambda g: (0, g, 0)),       # targets
                pl.BlockSpec((T, Bs, 1), lambda g: (0, g, 0)),       # mask
                pl.BlockSpec((H, 4 * H), lambda g: (0, 0)),          # W_hh
                pl.BlockSpec((Bs, H), lambda g: (g, 0)),             # h0
                pl.BlockSpec((Bs, H), lambda g: (g, 0)),             # c0
                pl.BlockSpec((H, Np), lambda g: (0, 0)),             # W_out
                pl.BlockSpec((1, Np), lambda g: (0, 0)),             # b_out
            ],
            out_specs=pl.BlockSpec((1, 1, 1), lambda g: (g, 0, 0)),
        ),
        compiler_params=pltpu.CompilerParams(
            dimension_semantics=("parallel",)),                # shards independent
    )(gate_in, tgt_p, mask_p, wh_bf, h0_p, c0_p, wout_p, bout_p)

    # losses / torch.sum(atom_mask)  (glue)
    return jnp.sum(loss_parts) / jnp.sum(mask)


if __name__ == "__main__":
    # small shapes consistent with the module's forward
    B, T = 4, 8                 # batch, max_len_tag
    x_dims, ccg_dims, H = 32, 16, 32
    n_tag, PAD = 16, 0

    key = jax.random.PRNGKey(0)
    keys = jax.random.split(key, 12)

    x = jax.random.normal(keys[0], (B, x_dims), jnp.float32)
    atom_truth = jax.random.randint(keys[1], (B, T), 1, n_tag)          # targets
    atom_mask = jax.random.bernoulli(keys[2], 0.8, (B, T))
    atom_mask = atom_mask.at[:, 0].set(True)                            # ensure nonempty

    # Embedding(n_tag, ccg_dims, padding_idx=PAD): row PAD zeroed
    emb = jax.random.normal(keys[3], (n_tag, ccg_dims), jnp.float32)
    emb = emb.at[PAD].set(0.0)

    # LSTM params (torch default-like uniform init), stored transposed for x @ W
    k = 1.0 / jnp.sqrt(H)
    wx = jax.random.uniform(keys[4], (x_dims, 4 * H), jnp.float32, -k, k)
    wc = jax.random.uniform(keys[5], (ccg_dims, 4 * H), jnp.float32, -k, k)
    wh = jax.random.uniform(keys[6], (H, 4 * H), jnp.float32, -k, k)
    b = (jax.random.uniform(keys[7], (1, 4 * H), jnp.float32, -k, k)
         + jax.random.uniform(keys[8], (1, 4 * H), jnp.float32, -k, k))

    # output projection ("MLP" h_dims -> n_tag)
    wout = jax.random.uniform(keys[9], (H, n_tag), jnp.float32, -k, k)
    bout = jax.random.uniform(keys[10], (1, n_tag), jnp.float32, -k, k)

    # h0, c0 = randn in the reference; deterministic here
    h0c0 = jax.random.normal(keys[11], (2, B, H), jnp.float32)
    h0, c0 = h0c0[0], h0c0[1]

    # teacher-forced input tokens: step 0 uses token 0, step t uses truth[:, t-1]
    in_tokens = jnp.concatenate(
        [jnp.zeros((1, B), jnp.int32), atom_truth.T[:-1].astype(jnp.int32)], axis=0)  # (T,B)
    ccg_seq = emb[in_tokens]                                             # (T,B,ccg)
    targets = atom_truth.T.astype(jnp.int32)                             # (T,B)
    mask_f = atom_mask.T.astype(jnp.float32)                             # (T,B)

    loss = jax.jit(lstm_decoder_loss)(
        x, ccg_seq, targets, mask_f, wx, wc, wh, b, h0, c0, wout, bout)
    jax.block_until_ready(loss)
    assert jnp.isfinite(loss)
    print("KERNEL_OK")
</pallas_src>

<mosaic_0001>
module attributes {stable_mosaic.version = 11 : i64} {
  func.func @lstm_decoder_kernel(%arg0: i32, %arg1: memref<8x8x128xf32, #tpu.memory_space<vmem>>, %arg2: memref<8x8x1xi32, #tpu.memory_space<vmem>>, %arg3: memref<8x8x1xf32, #tpu.memory_space<vmem>>, %arg4: memref<32x128xbf16, #tpu.memory_space<vmem>>, %arg5: memref<8x32xf32, #tpu.memory_space<vmem>>, %arg6: memref<8x32xf32, #tpu.memory_space<vmem>>, %arg7: memref<32x128xbf16, #tpu.memory_space<vmem>>, %arg8: memref<1x128xf32, #tpu.memory_space<vmem>>, %arg9: memref<1x1x1xf32, #tpu.memory_space<vmem>>) attributes {dimension_semantics = [#tpu.dimension_semantics<parallel>], iteration_bounds = array<i64: 1>, scalar_prefetch = 0 : i64, scratch_operands = 0 : i64, tpu.core_type = #tpu.core_type<tc>, window_params = [{transform_indices = @transform_0, window_bounds = array<i64: 8, 8, 128>}, {transform_indices = @transform_1, window_bounds = array<i64: 8, 8, 1>}, {transform_indices = @transform_2, window_bounds = array<i64: 8, 8, 1>}, {pipeline_mode = #tpu.pipeline_mode<synchronous>, transform_indices = @transform_3, window_bounds = array<i64: 32, 128>}, {transform_indices = @transform_4, window_bounds = array<i64: 8, 32>}, {transform_indices = @transform_5, window_bounds = array<i64: 8, 32>}, {pipeline_mode = #tpu.pipeline_mode<synchronous>, transform_indices = @transform_6, window_bounds = array<i64: 32, 128>}, {pipeline_mode = #tpu.pipeline_mode<synchronous>, transform_indices = @transform_7, window_bounds = array<i64: 1, 128>}, {transform_indices = @transform_8, window_bounds = array<i64: 1, 1, 1>}]} {
    %c0 = arith.constant 0 : index
    %c0_0 = arith.constant 0 : index
    %0 = vector.load %arg4[%c0, %c0_0] : memref<32x128xbf16, #tpu.memory_space<vmem>>, vector<32x128xbf16>
    %c0_1 = arith.constant 0 : index
    %c0_2 = arith.constant 0 : index
    %1 = vector.load %arg7[%c0_1, %c0_2] : memref<32x128xbf16, #tpu.memory_space<vmem>>, vector<32x128xbf16>
    %c0_3 = arith.constant 0 : index
    %c0_4 = arith.constant 0 : index
    %2 = vector.load %arg8[%c0_3, %c0_4] : memref<1x128xf32, #tpu.memory_space<vmem>>, vector<1x128xf32>
    %3 = tpu.iota {dimensions = array<i32: 1>} : vector<8x128xi32>
    %c0_5 = arith.constant 0 : index
    %c0_6 = arith.constant 0 : index
    %4 = vector.load %arg5[%c0_5, %c0_6] : memref<8x32xf32, #tpu.memory_space<vmem>>, vector<8x32xf32>
    %c0_7 = arith.constant 0 : index
    %c0_8 = arith.constant 0 : index
    %5 = vector.load %arg6[%c0_7, %c0_8] : memref<8x32xf32, #tpu.memory_space<vmem>>, vector<8x32xf32>
    %cst = arith.constant 0.000000e+00 : f32
    %6 = vector.broadcast %cst : f32 to vector<1x1xf32>
    %c0_i32 = arith.constant 0 : i32
    %7 = arith.index_cast %c0_i32 : i32 to index
    %c0_9 = arith.constant 0 : index
    %c0_10 = arith.constant 0 : index
    %8 = vector.load %arg1[%7, %c0_9, %c0_10] : memref<8x8x128xf32, #tpu.memory_space<vmem>>, vector<1x8x128xf32>
    %9 = vector.shape_cast %8 : vector<1x8x128xf32> to vector<8x128xf32>
    %10 = arith.truncf %4 : vector<8x32xf32> to vector<8x32xbf16>
    %cst_11 = arith.constant dense<0.000000e+00> : vector<8x128xf32>
    %11 = tpu.matmul %10, %0, %cst_11 {dimension_numbers = #tpu.dot_dimension_numbers<[1], [0], [0], [1], [0, 0, 1, 1], [], []>} : vector<8x32xbf16>, vector<32x128xbf16>, vector<8x128xf32> -> vector<8x128xf32>
    %12 = arith.addf %9, %11 : vector<8x128xf32>
    %13 = vector.extract_strided_slice %12 {offsets = [0, 0], sizes = [8, 32], strides = [1, 1]} : vector<8x128xf32> to vector<8x32xf32>
    %14 = arith.negf %13 : vector<8x32xf32>
    %15 = math.exp %14 : vector<8x32xf32>
    %cst_12 = arith.constant 1.000000e+00 : f32
    %16 = vector.broadcast %cst_12 : f32 to vector<8x32xf32>
    %17 = arith.addf %16, %15 : vector<8x32xf32>
    %18 = arith.divf %16, %17 : vector<8x32xf32>
    %19 = vector.extract_strided_slice %12 {offsets = [0, 32], sizes = [8, 32], strides = [1, 1]} : vector<8x128xf32> to vector<8x32xf32>
    %20 = arith.negf %19 : vector<8x32xf32>
    %21 = math.exp %20 : vector<8x32xf32>
    %cst_13 = arith.constant 1.000000e+00 : f32
    %22 = vector.broadcast %cst_13 : f32 to vector<8x32xf32>
    %23 = arith.addf %22, %21 : vector<8x32xf32>
    %24 = arith.divf %22, %23 : vector<8x32xf32>
    %25 = vector.extract_strided_slice %12 {offsets = [0, 64], sizes = [8, 32], strides = [1, 1]} : vector<8x128xf32> to vector<8x32xf32>
    %26 = math.tanh %25 : vector<8x32xf32>
    %27 = vector.extract_strided_slice %12 {offsets = [0, 96], sizes = [8, 32], strides = [1, 1]} : vector<8x128xf32> to vector<8x32xf32>
    %28 = arith.negf %27 : vector<8x32xf32>
    %29 = math.exp %28 : vector<8x32xf32>
    %cst_14 = arith.constant 1.000000e+00 : f32
    %30 = vector.broadcast %cst_14 : f32 to vector<8x32xf32>
    %31 = arith.addf %30, %29 : vector<8x32xf32>
    %32 = arith.divf %30, %31 : vector<8x32xf32>
    %33 = arith.mulf %24, %5 : vector<8x32xf32>
    %34 = arith.mulf %18, %26 : vector<8x32xf32>
    %35 = arith.addf %33, %34 : vector<8x32xf32>
    %36 = math.tanh %35 : vector<8x32xf32>
    %37 = arith.mulf %32, %36 : vector<8x32xf32>
    %38 = arith.truncf %37 : vector<8x32xf32> to vector<8x32xbf16>
    %cst_15 = arith.constant dense<0.000000e+00> : vector<8x128xf32>
    %39 = tpu.matmul %38, %1, %cst_15 {dimension_numbers = #tpu.dot_dimension_numbers<[1], [0], [0], [1], [0, 0, 1, 1], [], []>} : vector<8x32xbf16>, vector<32x128xbf16>, vector<8x128xf32> -> vector<8x128xf32>
    %40 = vector.broadcast %2 : vector<1x128xf32> to vector<8x128xf32>
    %41 = arith.addf %39, %40 : vector<8x128xf32>
    %cst_16 = arith.constant dense<0xFF800000> : vector<8xf32>
    %42 = vector.multi_reduction <maximumf>, %41, %cst_16 [1] : vector<8x128xf32> to vector<8xf32>
    %43 = vector.shape_cast %42 : vector<8xf32> to vector<8x1xf32>
    %44 = vector.broadcast %43 : vector<8x1xf32> to vector<8x128xf32>
    %45 = arith.subf %41, %44 : vector<8x128xf32>
    %46 = math.exp %45 : vector<8x128xf32>
    %cst_17 = arith.constant dense<0.000000e+00> : vector<8xf32>
    %47 = vector.multi_reduction <add>, %46, %cst_17 [1] : vector<8x128xf32> to vector<8xf32>
    %48 = vector.shape_cast %47 : vector<8xf32> to vector<8x1xf32>
    %49 = math.log %48 : vector<8x1xf32>
    %50 = arith.addf %43, %49 : vector<8x1xf32>
    %51 = arith.index_cast %c0_i32 : i32 to index
    %c0_18 = arith.constant 0 : index
    %c0_19 = arith.constant 0 : index
    %52 = vector.load %arg2[%51, %c0_18, %c0_19] : memref<8x8x1xi32, #tpu.memory_space<vmem>>, vector<1x8x1xi32>
    %53 = vector.shape_cast %52 : vector<1x8x1xi32> to vector<8x1xi32>
    %54 = vector.broadcast %53 : vector<8x1xi32> to vector<8x128xi32>
    %55 = arith.cmpi eq, %3, %54 : vector<8x128xi32>
    %cst_20 = arith.constant 0.000000e+00 : f32
    %56 = vector.broadcast %cst_20 : f32 to vector<8x128xf32>
    %57 = arith.select %55, %41, %56 : vector<8x128xi1>, vector<8x128xf32>
    %cst_21 = arith.constant dense<0.000000e+00> : vector<8xf32>
    %58 = vector.multi_reduction <add>, %57, %cst_21 [1] : vector<8x128xf32> to vector<8xf32>
    %59 = vector.shape_cast %58 : vector<8xf32> to vector<8x1xf32>
    %60 = arith.subf %50, %59 : vector<8x1xf32>
    %61 = arith.index_cast %c0_i32 : i32 to index
    %c0_22 = arith.constant 0 : index
    %c0_23 = arith.constant 0 : index
    %62 = vector.load %arg3[%61, %c0_22, %c0_23] : memref<8x8x1xf32, #tpu.memory_space<vmem>>, vector<1x8x1xf32>
    %63 = vector.shape_cast %62 : vector<1x8x1xf32> to vector<8x1xf32>
    %64 = arith.mulf %60, %63 : vector<8x1xf32>
    %65 = vector.shape_cast %64 : vector<8x1xf32> to vector<1x8x1xf32>
    %cst_24 = arith.constant dense<0.000000e+00> : vector<1xf32>
    %66 = vector.multi_reduction <add>, %65, %cst_24 [1, 2] : vector<1x8x1xf32> to vector<1xf32>
    %67 = vector.shape_cast %66 : vector<1xf32> to vector<1x1x1xf32>
    %68 = vector.extract %67[0, 0, 0] : f32 from vector<1x1x1xf32>
    %69 = vector.broadcast %68 : f32 to vector<1x1xf32>
    %70 = arith.addf %6, %69 : vector<1x1xf32>
    %c1_i32 = arith.constant 1 : i32
    %71 = arith.index_cast %c1_i32 : i32 to index
    %c0_25 = arith.constant 0 : index
    %c0_26 = arith.constant 0 : index
    %72 = vector.load %arg1[%71, %c0_25, %c0_26] : memref<8x8x128xf32, #tpu.memory_space<vmem>>, vector<1x8x128xf32>
    %73 = vector.shape_cast %72 : vector<1x8x128xf32> to vector<8x128xf32>
    %74 = arith.truncf %37 : vector<8x32xf32> to vector<8x32xbf16>
    %cst_27 = arith.constant dense<0.000000e+00> : vector<8x128xf32>
    %75 = tpu.matmul %74, %0, %cst_27 {dimension_numbers = #tpu.dot_dimension_numbers<[1], [0], [0], [1], [0, 0, 1, 1], [], []>} : vector<8x32xbf16>, vector<32x128xbf16>, vector<8x128xf32> -> vector<8x128xf32>
    %76 = arith.addf %73, %75 : vector<8x128xf32>
    %77 = vector.extract_strided_slice %76 {offsets = [0, 0], sizes = [8, 32], strides = [1, 1]} : vector<8x128xf32> to vector<8x32xf32>
    %78 = arith.negf %77 : vector<8x32xf32>
    %79 = math.exp %78 : vector<8x32xf32>
    %cst_28 = arith.constant 1.000000e+00 : f32
    %80 = vector.broadcast %cst_28 : f32 to vector<8x32xf32>
    %81 = arith.addf %80, %79 : vector<8x32xf32>
    %82 = arith.divf %80, %81 : vector<8x32xf32>
    %83 = vector.extract_strided_slice %76 {offsets = [0, 32], sizes = [8, 32], strides = [1, 1]} : vector<8x128xf32> to vector<8x32xf32>
    %84 = arith.negf %83 : vector<8x32xf32>
    %85 = math.exp %84 : vector<8x32xf32>
    %cst_29 = arith.constant 1.000000e+00 : f32
    %86 = vector.broadcast %cst_29 : f32 to vector<8x32xf32>
    %87 = arith.addf %86, %85 : vector<8x32xf32>
    %88 = arith.divf %86, %87 : vector<8x32xf32>
    %89 = vector.extract_strided_slice %76 {offsets = [0, 64], sizes = [8, 32], strides = [1, 1]} : vector<8x128xf32> to vector<8x32xf32>
    %90 = math.tanh %89 : vector<8x32xf32>
    %91 = vector.extract_strided_slice %76 {offsets = [0, 96], sizes = [8, 32], strides = [1, 1]} : vector<8x128xf32> to vector<8x32xf32>
    %92 = arith.negf %91 : vector<8x32xf32>
    %93 = math.exp %92 : vector<8x32xf32>
    %cst_30 = arith.constant 1.000000e+00 : f32
    %94 = vector.broadcast %cst_30 : f32 to vector<8x32xf32>
    %95 = arith.addf %94, %93 : vector<8x32xf32>
    %96 = arith.divf %94, %95 : vector<8x32xf32>
    %97 = arith.mulf %88, %35 : vector<8x32xf32>
    %98 = arith.mulf %82, %90 : vector<8x32xf32>
    %99 = arith.addf %97, %98 : vector<8x32xf32>
    %100 = math.tanh %99 : vector<8x32xf32>
    %101 = arith.mulf %96, %100 : vector<8x32xf32>
    %102 = arith.truncf %101 : vector<8x32xf32> to vector<8x32xbf16>
    %cst_31 = arith.constant dense<0.000000e+00> : vector<8x128xf32>
    %103 = tpu.matmul %102, %1, %cst_31 {dimension_numbers = #tpu.dot_dimension_numbers<[1], [0], [0], [1], [0, 0, 1, 1], [], []>} : vector<8x32xbf16>, vector<32x128xbf16>, vector<8x128xf32> -> vector<8x128xf32>
    %104 = vector.broadcast %2 : vector<1x128xf32> to vector<8x128xf32>
    %105 = arith.addf %103, %104 : vector<8x128xf32>
    %cst_32 = arith.constant dense<0xFF800000> : vector<8xf32>
    %106 = vector.multi_reduction <maximumf>, %105, %cst_32 [1] : vector<8x128xf32> to vector<8xf32>
    %107 = vector.shape_cast %106 : vector<8xf32> to vector<8x1xf32>
    %108 = vector.broadcast %107 : vector<8x1xf32> to vector<8x128xf32>
    %109 = arith.subf %105, %108 : vector<8x128xf32>
    %110 = math.exp %109 : vector<8x128xf32>
    %cst_33 = arith.constant dense<0.000000e+00> : vector<8xf32>
    %111 = vector.multi_reduction <add>, %110, %cst_33 [1] : vector<8x128xf32> to vector<8xf32>
    %112 = vector.shape_cast %111 : vector<8xf32> to vector<8x1xf32>
    %113 = math.log %112 : vector<8x1xf32>
    %114 = arith.addf %107, %113 : vector<8x1xf32>
    %115 = arith.index_cast %c1_i32 : i32 to index
    %c0_34 = arith.constant 0 : index
    %c0_35 = arith.constant 0 : index
    %116 = vector.load %arg2[%115, %c0_34, %c0_35] : memref<8x8x1xi32, #tpu.memory_space<vmem>>, vector<1x8x1xi32>
    %117 = vector.shape_cast %116 : vector<1x8x1xi32> to vector<8x1xi32>
    %118 = vector.broadcast %117 : vector<8x1xi32> to vector<8x128xi32>
    %119 = arith.cmpi eq, %3, %118 : vector<8x128xi32>
    %cst_36 = arith.constant 0.000000e+00 : f32
    %120 = vector.broadcast %cst_36 : f32 to vector<8x128xf32>
    %121 = arith.select %119, %105, %120 : vector<8x128xi1>, vector<8x128xf32>
    %cst_37 = arith.constant dense<0.000000e+00> : vector<8xf32>
    %122 = vector.multi_reduction <add>, %121, %cst_37 [1] : vector<8x128xf32> to vector<8xf32>
    %123 = vector.shape_cast %122 : vector<8xf32> to vector<8x1xf32>
    %124 = arith.subf %114, %123 : vector<8x1xf32>
    %125 = arith.index_cast %c1_i32 : i32 to index
    %c0_38 = arith.constant 0 : index
    %c0_39 = arith.constant 0 : index
    %126 = vector.load %arg3[%125, %c0_38, %c0_39] : memref<8x8x1xf32, #tpu.memory_space<vmem>>, vector<1x8x1xf32>
    %127 = vector.shape_cast %126 : vector<1x8x1xf32> to vector<8x1xf32>
    %128 = arith.mulf %124, %127 : vector<8x1xf32>
    %129 = vector.shape_cast %128 : vector<8x1xf32> to vector<1x8x1xf32>
    %cst_40 = arith.constant dense<0.000000e+00> : vector<1xf32>
    %130 = vector.multi_reduction <add>, %129, %cst_40 [1, 2] : vector<1x8x1xf32> to vector<1xf32>
    %131 = vector.shape_cast %130 : vector<1xf32> to vector<1x1x1xf32>
    %132 = vector.extract %131[0, 0, 0] : f32 from vector<1x1x1xf32>
    %133 = vector.broadcast %132 : f32 to vector<1x1xf32>
    %134 = arith.addf %70, %133 : vector<1x1xf32>
    %c2_i32 = arith.constant 2 : i32
    %135 = arith.index_cast %c2_i32 : i32 to index
    %c0_41 = arith.constant 0 : index
    %c0_42 = arith.constant 0 : index
    %136 = vector.load %arg1[%135, %c0_41, %c0_42] : memref<8x8x128xf32, #tpu.memory_space<vmem>>, vector<1x8x128xf32>
    %137 = vector.shape_cast %136 : vector<1x8x128xf32> to vector<8x128xf32>
    %138 = arith.truncf %101 : vector<8x32xf32> to vector<8x32xbf16>
    %cst_43 = arith.constant dense<0.000000e+00> : vector<8x128xf32>
    %139 = tpu.matmul %138, %0, %cst_43 {dimension_numbers = #tpu.dot_dimension_numbers<[1], [0], [0], [1], [0, 0, 1, 1], [], []>} : vector<8x32xbf16>, vector<32x128xbf16>, vector<8x128xf32> -> vector<8x128xf32>
    %140 = arith.addf %137, %139 : vector<8x128xf32>
    %141 = vector.extract_strided_slice %140 {offsets = [0, 0], sizes = [8, 32], strides = [1, 1]} : vector<8x128xf32> to vector<8x32xf32>
    %142 = arith.negf %141 : vector<8x32xf32>
    %143 = math.exp %142 : vector<8x32xf32>
    %cst_44 = arith.constant 1.000000e+00 : f32
    %144 = vector.broadcast %cst_44 : f32 to vector<8x32xf32>
    %145 = arith.addf %144, %143 : vector<8x32xf32>
    %146 = arith.divf %144, %145 : vector<8x32xf32>
    %147 = vector.extract_strided_slice %140 {offsets = [0, 32], sizes = [8, 32], strides = [1, 1]} : vector<8x128xf32> to vector<8x32xf32>
    %148 = arith.negf %147 : vector<8x32xf32>
    %149 = math.exp %148 : vector<8x32xf32>
    %cst_45 = arith.constant 1.000000e+00 : f32
    %150 = vector.broadcast %cst_45 : f32 to vector<8x32xf32>
    %151 = arith.addf %150, %149 : vector<8x32xf32>
    %152 = arith.divf %150, %151 : vector<8x32xf32>
    %153 = vector.extract_strided_slice %140 {offsets = [0, 64], sizes = [8, 32], strides = [1, 1]} : vector<8x128xf32> to vector<8x32xf32>
    %154 = math.tanh %153 : vector<8x32xf32>
    %155 = vector.extract_strided_slice %140 {offsets = [0, 96], sizes = [8, 32], strides = [1, 1]} : vector<8x128xf32> to vector<8x32xf32>
    %156 = arith.negf %155 : vector<8x32xf32>
    %157 = math.exp %156 : vector<8x32xf32>
    %cst_46 = arith.constant 1.000000e+00 : f32
    %158 = vector.broadcast %cst_46 : f32 to vector<8x32xf32>
    %159 = arith.addf %158, %157 : vector<8x32xf32>
    %160 = arith.divf %158, %159 : vector<8x32xf32>
    %161 = arith.mulf %152, %99 : vector<8x32xf32>
    %162 = arith.mulf %146, %154 : vector<8x32xf32>
    %163 = arith.addf %161, %162 : vector<8x32xf32>
    %164 = math.tanh %163 : vector<8x32xf32>
    %165 = arith.mulf %160, %164 : vector<8x32xf32>
    %166 = arith.truncf %165 : vector<8x32xf32> to vector<8x32xbf16>
    %cst_47 = arith.constant dense<0.000000e+00> : vector<8x128xf32>
    %167 = tpu.matmul %166, %1, %cst_47 {dimension_numbers = #tpu.dot_dimension_numbers<[1], [0], [0], [1], [0, 0, 1, 1], [], []>} : vector<8x32xbf16>, vector<32x128xbf16>, vector<8x128xf32> -> vector<8x128xf32>
    %168 = vector.broadcast %2 : vector<1x128xf32> to vector<8x128xf32>
    %169 = arith.addf %167, %168 : vector<8x128xf32>
    %cst_48 = arith.constant dense<0xFF800000> : vector<8xf32>
    %170 = vector.multi_reduction <maximumf>, %169, %cst_48 [1] : vector<8x128xf32> to vector<8xf32>
    %171 = vector.shape_cast %170 : vector<8xf32> to vector<8x1xf32>
    %172 = vector.broadcast %171 : vector<8x1xf32> to vector<8x128xf32>
    %173 = arith.subf %169, %172 : vector<8x128xf32>
    %174 = math.exp %173 : vector<8x128xf32>
    %cst_49 = arith.constant dense<0.000000e+00> : vector<8xf32>
    %175 = vector.multi_reduction <add>, %174, %cst_49 [1] : vector<8x128xf32> to vector<8xf32>
    %176 = vector.shape_cast %175 : vector<8xf32> to vector<8x1xf32>
    %177 = math.log %176 : vector<8x1xf32>
    %178 = arith.addf %171, %177 : vector<8x1xf32>
    %179 = arith.index_cast %c2_i32 : i32 to index
    %c0_50 = arith.constant 0 : index
    %c0_51 = arith.constant 0 : index
    %180 = vector.load %arg2[%179, %c0_50, %c0_51] : memref<8x8x1xi32, #tpu.memory_space<vmem>>, vector<1x8x1xi32>
    %181 = vector.shape_cast %180 : vector<1x8x1xi32> to vector<8x1xi32>
    %182 = vector.broadcast %181 : vector<8x1xi32> to vector<8x128xi32>
    %183 = arith.cmpi eq, %3, %182 : vector<8x128xi32>
    %cst_52 = arith.constant 0.000000e+00 : f32
    %184 = vector.broadcast %cst_52 : f32 to vector<8x128xf32>
    %185 = arith.select %183, %169, %184 : vector<8x128xi1>, vector<8x128xf32>
    %cst_53 = arith.constant dense<0.000000e+00> : vector<8xf32>
    %186 = vector.multi_reduction <add>, %185, %cst_53 [1] : vector<8x128xf32> to vector<8xf32>
    %187 = vector.shape_cast %186 : vector<8xf32> to vector<8x1xf32>
    %188 = arith.subf %178, %187 : vector<8x1xf32>
    %189 = arith.index_cast %c2_i32 : i32 to index
    %c0_54 = arith.constant 0 : index
    %c0_55 = arith.constant 0 : index
    %190 = vector.load %arg3[%189, %c0_54, %c0_55] : memref<8x8x1xf32, #tpu.memory_space<vmem>>, vector<1x8x1xf32>
    %191 = vector.shape_cast %190 : vector<1x8x1xf32> to vector<8x1xf32>
    %192 = arith.mulf %188, %191 : vector<8x1xf32>
    %193 = vector.shape_cast %192 : vector<8x1xf32> to vector<1x8x1xf32>
    %cst_56 = arith.constant dense<0.000000e+00> : vector<1xf32>
    %194 = vector.multi_reduction <add>, %193, %cst_56 [1, 2] : vector<1x8x1xf32> to vector<1xf32>
    %195 = vector.shape_cast %194 : vector<1xf32> to vector<1x1x1xf32>
    %196 = vector.extract %195[0, 0, 0] : f32 from vector<1x1x1xf32>
    %197 = vector.broadcast %196 : f32 to vector<1x1xf32>
    %198 = arith.addf %134, %197 : vector<1x1xf32>
    %c3_i32 = arith.constant 3 : i32
    %199 = arith.index_cast %c3_i32 : i32 to index
    %c0_57 = arith.constant 0 : index
    %c0_58 = arith.constant 0 : index
    %200 = vector.load %arg1[%199, %c0_57, %c0_58] : memref<8x8x128xf32, #tpu.memory_space<vmem>>, vector<1x8x128xf32>
    %201 = vector.shape_cast %200 : vector<1x8x128xf32> to vector<8x128xf32>
    %202 = arith.truncf %165 : vector<8x32xf32> to vector<8x32xbf16>
    %cst_59 = arith.constant dense<0.000000e+00> : vector<8x128xf32>
    %203 = tpu.matmul %202, %0, %cst_59 {dimension_numbers = #tpu.dot_dimension_numbers<[1], [0], [0], [1], [0, 0, 1, 1], [], []>} : vector<8x32xbf16>, vector<32x128xbf16>, vector<8x128xf32> -> vector<8x128xf32>
    %204 = arith.addf %201, %203 : vector<8x128xf32>
    %205 = vector.extract_strided_slice %204 {offsets = [0, 0], sizes = [8, 32], strides = [1, 1]} : vector<8x128xf32> to vector<8x32xf32>
    %206 = arith.negf %205 : vector<8x32xf32>
    %207 = math.exp %206 : vector<8x32xf32>
    %cst_60 = arith.constant 1.000000e+00 : f32
    %208 = vector.broadcast %cst_60 : f32 to vector<8x32xf32>
    %209 = arith.addf %208, %207 : vector<8x32xf32>
    %210 = arith.divf %208, %209 : vector<8x32xf32>
    %211 = vector.extract_strided_slice %204 {offsets = [0, 32], sizes = [8, 32], strides = [1, 1]} : vector<8x128xf32> to vector<8x32xf32>
    %212 = arith.negf %211 : vector<8x32xf32>
    %213 = math.exp %212 : vector<8x32xf32>
    %cst_61 = arith.constant 1.000000e+00 : f32
    %214 = vector.broadcast %cst_61 : f32 to vector<8x32xf32>
    %215 = arith.addf %214, %213 : vector<8x32xf32>
    %216 = arith.divf %214, %215 : vector<8x32xf32>
    %217 = vector.extract_strided_slice %204 {offsets = [0, 64], sizes = [8, 32], strides = [1, 1]} : vector<8x128xf32> to vector<8x32xf32>
    %218 = math.tanh %217 : vector<8x32xf32>
    %219 = vector.extract_strided_slice %204 {offsets = [0, 96], sizes = [8, 32], strides = [1, 1]} : vector<8x128xf32> to vector<8x32xf32>
    %220 = arith.negf %219 : vector<8x32xf32>
    %221 = math.exp %220 : vector<8x32xf32>
    %cst_62 = arith.constant 1.000000e+00 : f32
    %222 = vector.broadcast %cst_62 : f32 to vector<8x32xf32>
    %223 = arith.addf %222, %221 : vector<8x32xf32>
    %224 = arith.divf %222, %223 : vector<8x32xf32>
    %225 = arith.mulf %216, %163 : vector<8x32xf32>
    %226 = arith.mulf %210, %218 : vector<8x32xf32>
    %227 = arith.addf %225, %226 : vector<8x32xf32>
    %228 = math.tanh %227 : vector<8x32xf32>
    %229 = arith.mulf %224, %228 : vector<8x32xf32>
    %230 = arith.truncf %229 : vector<8x32xf32> to vector<8x32xbf16>
    %cst_63 = arith.constant dense<0.000000e+00> : vector<8x128xf32>
    %231 = tpu.matmul %230, %1, %cst_63 {dimension_numbers = #tpu.dot_dimension_numbers<[1], [0], [0], [1], [0, 0, 1, 1], [], []>} : vector<8x32xbf16>, vector<32x128xbf16>, vector<8x128xf32> -> vector<8x128xf32>
    %232 = vector.broadcast %2 : vector<1x128xf32> to vector<8x128xf32>
    %233 = arith.addf %231, %232 : vector<8x128xf32>
    %cst_64 = arith.constant dense<0xFF800000> : vector<8xf32>
    %234 = vector.multi_reduction <maximumf>, %233, %cst_64 [1] : vector<8x128xf32> to vector<8xf32>
    %235 = vector.shape_cast %234 : vector<8xf32> to vector<8x1xf32>
    %236 = vector.broadcast %235 : vector<8x1xf32> to vector<8x128xf32>
    %237 = arith.subf %233, %236 : vector<8x128xf32>
    %238 = math.exp %237 : vector<8x128xf32>
    %cst_65 = arith.constant dense<0.000000e+00> : vector<8xf32>
    %239 = vector.multi_reduction <add>, %238, %cst_65 [1] : vector<8x128xf32> to vector<8xf32>
    %240 = vector.shape_cast %239 : vector<8xf32> to vector<8x1xf32>
    %241 = math.log %240 : vector<8x1xf32>
    %242 = arith.addf %235, %241 : vector<8x1xf32>
    %243 = arith.index_cast %c3_i32 : i32 to index
    %c0_66 = arith.constant 0 : index
    %c0_67 = arith.constant 0 : index
    %244 = vector.load %arg2[%243, %c0_66, %c0_67] : memref<8x8x1xi32, #tpu.memory_space<vmem>>, vector<1x8x1xi32>
    %245 = vector.shape_cast %244 : vector<1x8x1xi32> to vector<8x1xi32>
    %246 = vector.broadcast %245 : vector<8x1xi32> to vector<8x128xi32>
    %247 = arith.cmpi eq, %3, %246 : vector<8x128xi32>
    %cst_68 = arith.constant 0.000000e+00 : f32
    %248 = vector.broadcast %cst_68 : f32 to vector<8x128xf32>
    %249 = arith.select %247, %233, %248 : vector<8x128xi1>, vector<8x128xf32>
    %cst_69 = arith.constant dense<0.000000e+00> : vector<8xf32>
    %250 = vector.multi_reduction <add>, %249, %cst_69 [1] : vector<8x128xf32> to vector<8xf32>
    %251 = vector.shape_cast %250 : vector<8xf32> to vector<8x1xf32>
    %252 = arith.subf %242, %251 : vector<8x1xf32>
    %253 = arith.index_cast %c3_i32 : i32 to index
    %c0_70 = arith.constant 0 : index
    %c0_71 = arith.constant 0 : index
    %254 = vector.load %arg3[%253, %c0_70, %c0_71] : memref<8x8x1xf32, #tpu.memory_space<vmem>>, vector<1x8x1xf32>
    %255 = vector.shape_cast %254 : vector<1x8x1xf32> to vector<8x1xf32>
    %256 = arith.mulf %252, %255 : vector<8x1xf32>
    %257 = vector.shape_cast %256 : vector<8x1xf32> to vector<1x8x1xf32>
    %cst_72 = arith.constant dense<0.000000e+00> : vector<1xf32>
    %258 = vector.multi_reduction <add>, %257, %cst_72 [1, 2] : vector<1x8x1xf32> to vector<1xf32>
    %259 = vector.shape_cast %258 : vector<1xf32> to vector<1x1x1xf32>
    %260 = vector.extract %259[0, 0, 0] : f32 from vector<1x1x1xf32>
    %261 = vector.broadcast %260 : f32 to vector<1x1xf32>
    %262 = arith.addf %198, %261 : vector<1x1xf32>
    %c4_i32 = arith.constant 4 : i32
    %263 = arith.index_cast %c4_i32 : i32 to index
    %c0_73 = arith.constant 0 : index
    %c0_74 = arith.constant 0 : index
    %264 = vector.load %arg1[%263, %c0_73, %c0_74] : memref<8x8x128xf32, #tpu.memory_space<vmem>>, vector<1x8x128xf32>
    %265 = vector.shape_cast %264 : vector<1x8x128xf32> to vector<8x128xf32>
    %266 = arith.truncf %229 : vector<8x32xf32> to vector<8x32xbf16>
    %cst_75 = arith.constant dense<0.000000e+00> : vector<8x128xf32>
    %267 = tpu.matmul %266, %0, %cst_75 {dimension_numbers = #tpu.dot_dimension_numbers<[1], [0], [0], [1], [0, 0, 1, 1], [], []>} : vector<8x32xbf16>, vector<32x128xbf16>, vector<8x128xf32> -> vector<8x128xf32>
    %268 = arith.addf %265, %267 : vector<8x128xf32>
    %269 = vector.extract_strided_slice %268 {offsets = [0, 0], sizes = [8, 32], strides = [1, 1]} : vector<8x128xf32> to vector<8x32xf32>
    %270 = arith.negf %269 : vector<8x32xf32>
    %271 = math.exp %270 : vector<8x32xf32>
    %cst_76 = arith.constant 1.000000e+00 : f32
    %272 = vector.broadcast %cst_76 : f32 to vector<8x32xf32>
    %273 = arith.addf %272, %271 : vector<8x32xf32>
    %274 = arith.divf %272, %273 : vector<8x32xf32>
    %275 = vector.extract_strided_slice %268 {offsets = [0, 32], sizes = [8, 32], strides = [1, 1]} : vector<8x128xf32> to vector<8x32xf32>
    %276 = arith.negf %275 : vector<8x32xf32>
    %277 = math.exp %276 : vector<8x32xf32>
    %cst_77 = arith.constant 1.000000e+00 : f32
    %278 = vector.broadcast %cst_77 : f32 to vector<8x32xf32>
    %279 = arith.addf %278, %277 : vector<8x32xf32>
    %280 = arith.divf %278, %279 : vector<8x32xf32>
    %281 = vector.extract_strided_slice %268 {offsets = [0, 64], sizes = [8, 32], strides = [1, 1]} : vector<8x128xf32> to vector<8x32xf32>
    %282 = math.tanh %281 : vector<8x32xf32>
    %283 = vector.extract_strided_slice %268 {offsets = [0, 96], sizes = [8, 32], strides = [1, 1]} : vector<8x128xf32> to vector<8x32xf32>
    %284 = arith.negf %283 : vector<8x32xf32>
    %285 = math.exp %284 : vector<8x32xf32>
    %cst_78 = arith.constant 1.000000e+00 : f32
    %286 = vector.broadcast %cst_78 : f32 to vector<8x32xf32>
    %287 = arith.addf %286, %285 : vector<8x32xf32>
    %288 = arith.divf %286, %287 : vector<8x32xf32>
    %289 = arith.mulf %280, %227 : vector<8x32xf32>
    %290 = arith.mulf %274, %282 : vector<8x32xf32>
    %291 = arith.addf %289, %290 : vector<8x32xf32>
    %292 = math.tanh %291 : vector<8x32xf32>
    %293 = arith.mulf %288, %292 : vector<8x32xf32>
    %294 = arith.truncf %293 : vector<8x32xf32> to vector<8x32xbf16>
    %cst_79 = arith.constant dense<0.000000e+00> : vector<8x128xf32>
    %295 = tpu.matmul %294, %1, %cst_79 {dimension_numbers = #tpu.dot_dimension_numbers<[1], [0], [0], [1], [0, 0, 1, 1], [], []>} : vector<8x32xbf16>, vector<32x128xbf16>, vector<8x128xf32> -> vector<8x128xf32>
    %296 = vector.broadcast %2 : vector<1x128xf32> to vector<8x128xf32>
    %297 = arith.addf %295, %296 : vector<8x128xf32>
    %cst_80 = arith.constant dense<0xFF800000> : vector<8xf32>
    %298 = vector.multi_reduction <maximumf>, %297, %cst_80 [1] : vector<8x128xf32> to vector<8xf32>
    %299 = vector.shape_cast %298 : vector<8xf32> to vector<8x1xf32>
    %300 = vector.broadcast %299 : vector<8x1xf32> to vector<8x128xf32>
    %301 = arith.subf %297, %300 : vector<8x128xf32>
    %302 = math.exp %301 : vector<8x128xf32>
    %cst_81 = arith.constant dense<0.000000e+00> : vector<8xf32>
    %303 = vector.multi_reduction <add>, %302, %cst_81 [1] : vector<8x128xf32> to vector<8xf32>
    %304 = vector.shape_cast %303 : vector<8xf32> to vector<8x1xf32>
    %305 = math.log %304 : vector<8x1xf32>
    %306 = arith.addf %299, %305 : vector<8x1xf32>
    %307 = arith.index_cast %c4_i32 : i32 to index
    %c0_82 = arith.constant 0 : index
    %c0_83 = arith.constant 0 : index
    %308 = vector.load %arg2[%307, %c0_82, %c0_83] : memref<8x8x1xi32, #tpu.memory_space<vmem>>, vector<1x8x1xi32>
    %309 = vector.shape_cast %308 : vector<1x8x1xi32> to vector<8x1xi32>
    %310 = vector.broadcast %309 : vector<8x1xi32> to vector<8x128xi32>
    %311 = arith.cmpi eq, %3, %310 : vector<8x128xi32>
    %cst_84 = arith.constant 0.000000e+00 : f32
    %312 = vector.broadcast %cst_84 : f32 to vector<8x128xf32>
    %313 = arith.select %311, %297, %312 : vector<8x128xi1>, vector<8x128xf32>
    %cst_85 = arith.constant dense<0.000000e+00> : vector<8xf32>
    %314 = vector.multi_reduction <add>, %313, %cst_85 [1] : vector<8x128xf32> to vector<8xf32>
    %315 = vector.shape_cast %314 : vector<8xf32> to vector<8x1xf32>
    %316 = arith.subf %306, %315 : vector<8x1xf32>
    %317 = arith.index_cast %c4_i32 : i32 to index
    %c0_86 = arith.constant 0 : index
    %c0_87 = arith.constant 0 : index
    %318 = vector.load %arg3[%317, %c0_86, %c0_87] : memref<8x8x1xf32, #tpu.memory_space<vmem>>, vector<1x8x1xf32>
    %319 = vector.shape_cast %318 : vector<1x8x1xf32> to vector<8x1xf32>
    %320 = arith.mulf %316, %319 : vector<8x1xf32>
    %321 = vector.shape_cast %320 : vector<8x1xf32> to vector<1x8x1xf32>
    %cst_88 = arith.constant dense<0.000000e+00> : vector<1xf32>
    %322 = vector.multi_reduction <add>, %321, %cst_88 [1, 2] : vector<1x8x1xf32> to vector<1xf32>
    %323 = vector.shape_cast %322 : vector<1xf32> to vector<1x1x1xf32>
    %324 = vector.extract %323[0, 0, 0] : f32 from vector<1x1x1xf32>
    %325 = vector.broadcast %324 : f32 to vector<1x1xf32>
    %326 = arith.addf %262, %325 : vector<1x1xf32>
    %c5_i32 = arith.constant 5 : i32
    %327 = arith.index_cast %c5_i32 : i32 to index
    %c0_89 = arith.constant 0 : index
    %c0_90 = arith.constant 0 : index
    %328 = vector.load %arg1[%327, %c0_89, %c0_90] : memref<8x8x128xf32, #tpu.memory_space<vmem>>, vector<1x8x128xf32>
    %329 = vector.shape_cast %328 : vector<1x8x128xf32> to vector<8x128xf32>
    %330 = arith.truncf %293 : vector<8x32xf32> to vector<8x32xbf16>
    %cst_91 = arith.constant dense<0.000000e+00> : vector<8x128xf32>
    %331 = tpu.matmul %330, %0, %cst_91 {dimension_numbers = #tpu.dot_dimension_numbers<[1], [0], [0], [1], [0, 0, 1, 1], [], []>} : vector<8x32xbf16>, vector<32x128xbf16>, vector<8x128xf32> -> vector<8x128xf32>
    %332 = arith.addf %329, %331 : vector<8x128xf32>
    %333 = vector.extract_strided_slice %332 {offsets = [0, 0], sizes = [8, 32], strides = [1, 1]} : vector<8x128xf32> to vector<8x32xf32>
    %334 = arith.negf %333 : vector<8x32xf32>
    %335 = math.exp %334 : vector<8x32xf32>
    %cst_92 = arith.constant 1.000000e+00 : f32
    %336 = vector.broadcast %cst_92 : f32 to vector<8x32xf32>
    %337 = arith.addf %336, %335 : vector<8x32xf32>
    %338 = arith.divf %336, %337 : vector<8x32xf32>
    %339 = vector.extract_strided_slice %332 {offsets = [0, 32], sizes = [8, 32], strides = [1, 1]} : vector<8x128xf32> to vector<8x32xf32>
    %340 = arith.negf %339 : vector<8x32xf32>
    %341 = math.exp %340 : vector<8x32xf32>
    %cst_93 = arith.constant 1.000000e+00 : f32
    %342 = vector.broadcast %cst_93 : f32 to vector<8x32xf32>
    %343 = arith.addf %342, %341 : vector<8x32xf32>
    %344 = arith.divf %342, %343 : vector<8x32xf32>
    %345 = vector.extract_strided_slice %332 {offsets = [0, 64], sizes = [8, 32], strides = [1, 1]} : vector<8x128xf32> to vector<8x32xf32>
    %346 = math.tanh %345 : vector<8x32xf32>
    %347 = vector.extract_strided_slice %332 {offsets = [0, 96], sizes = [8, 32], strides = [1, 1]} : vector<8x128xf32> to vector<8x32xf32>
    %348 = arith.negf %347 : vector<8x32xf32>
    %349 = math.exp %348 : vector<8x32xf32>
    %cst_94 = arith.constant 1.000000e+00 : f32
    %350 = vector.broadcast %cst_94 : f32 to vector<8x32xf32>
    %351 = arith.addf %350, %349 : vector<8x32xf32>
    %352 = arith.divf %350, %351 : vector<8x32xf32>
    %353 = arith.mulf %344, %291 : vector<8x32xf32>
    %354 = arith.mulf %338, %346 : vector<8x32xf32>
    %355 = arith.addf %353, %354 : vector<8x32xf32>
    %356 = math.tanh %355 : vector<8x32xf32>
    %357 = arith.mulf %352, %356 : vector<8x32xf32>
    %358 = arith.truncf %357 : vector<8x32xf32> to vector<8x32xbf16>
    %cst_95 = arith.constant dense<0.000000e+00> : vector<8x128xf32>
    %359 = tpu.matmul %358, %1, %cst_95 {dimension_numbers = #tpu.dot_dimension_numbers<[1], [0], [0], [1], [0, 0, 1, 1], [], []>} : vector<8x32xbf16>, vector<32x128xbf16>, vector<8x128xf32> -> vector<8x128xf32>
    %360 = vector.broadcast %2 : vector<1x128xf32> to vector<8x128xf32>
    %361 = arith.addf %359, %360 : vector<8x128xf32>
    %cst_96 = arith.constant dense<0xFF800000> : vector<8xf32>
    %362 = vector.multi_reduction <maximumf>, %361, %cst_96 [1] : vector<8x128xf32> to vector<8xf32>
    %363 = vector.shape_cast %362 : vector<8xf32> to vector<8x1xf32>
    %364 = vector.broadcast %363 : vector<8x1xf32> to vector<8x128xf32>
    %365 = arith.subf %361, %364 : vector<8x128xf32>
    %366 = math.exp %365 : vector<8x128xf32>
    %cst_97 = arith.constant dense<0.000000e+00> : vector<8xf32>
    %367 = vector.multi_reduction <add>, %366, %cst_97 [1] : vector<8x128xf32> to vector<8xf32>
    %368 = vector.shape_cast %367 : vector<8xf32> to vector<8x1xf32>
    %369 = math.log %368 : vector<8x1xf32>
    %370 = arith.addf %363, %369 : vector<8x1xf32>
    %371 = arith.index_cast %c5_i32 : i32 to index
    %c0_98 = arith.constant 0 : index
    %c0_99 = arith.constant 0 : index
    %372 = vector.load %arg2[%371, %c0_98, %c0_99] : memref<8x8x1xi32, #tpu.memory_space<vmem>>, vector<1x8x1xi32>
    %373 = vector.shape_cast %372 : vector<1x8x1xi32> to vector<8x1xi32>
    %374 = vector.broadcast %373 : vector<8x1xi32> to vector<8x128xi32>
    %375 = arith.cmpi eq, %3, %374 : vector<8x128xi32>
    %cst_100 = arith.constant 0.000000e+00 : f32
    %376 = vector.broadcast %cst_100 : f32 to vector<8x128xf32>
    %377 = arith.select %375, %361, %376 : vector<8x128xi1>, vector<8x128xf32>
    %cst_101 = arith.constant dense<0.000000e+00> : vector<8xf32>
    %378 = vector.multi_reduction <add>, %377, %cst_101 [1] : vector<8x128xf32> to vector<8xf32>
    %379 = vector.shape_cast %378 : vector<8xf32> to vector<8x1xf32>
    %380 = arith.subf %370, %379 : vector<8x1xf32>
    %381 = arith.index_cast %c5_i32 : i32 to index
    %c0_102 = arith.constant 0 : index
    %c0_103 = arith.constant 0 : index
    %382 = vector.load %arg3[%381, %c0_102, %c0_103] : memref<8x8x1xf32, #tpu.memory_space<vmem>>, vector<1x8x1xf32>
    %383 = vector.shape_cast %382 : vector<1x8x1xf32> to vector<8x1xf32>
    %384 = arith.mulf %380, %383 : vector<8x1xf32>
    %385 = vector.shape_cast %384 : vector<8x1xf32> to vector<1x8x1xf32>
    %cst_104 = arith.constant dense<0.000000e+00> : vector<1xf32>
    %386 = vector.multi_reduction <add>, %385, %cst_104 [1, 2] : vector<1x8x1xf32> to vector<1xf32>
    %387 = vector.shape_cast %386 : vector<1xf32> to vector<1x1x1xf32>
    %388 = vector.extract %387[0, 0, 0] : f32 from vector<1x1x1xf32>
    %389 = vector.broadcast %388 : f32 to vector<1x1xf32>
    %390 = arith.addf %326, %389 : vector<1x1xf32>
    %c6_i32 = arith.constant 6 : i32
    %391 = arith.index_cast %c6_i32 : i32 to index
    %c0_105 = arith.constant 0 : index
    %c0_106 = arith.constant 0 : index
    %392 = vector.load %arg1[%391, %c0_105, %c0_106] : memref<8x8x128xf32, #tpu.memory_space<vmem>>, vector<1x8x128xf32>
    %393 = vector.shape_cast %392 : vector<1x8x128xf32> to vector<8x128xf32>
    %394 = arith.truncf %357 : vector<8x32xf32> to vector<8x32xbf16>
    %cst_107 = arith.constant dense<0.000000e+00> : vector<8x128xf32>
    %395 = tpu.matmul %394, %0, %cst_107 {dimension_numbers = #tpu.dot_dimension_numbers<[1], [0], [0], [1], [0, 0, 1, 1], [], []>} : vector<8x32xbf16>, vector<32x128xbf16>, vector<8x128xf32> -> vector<8x128xf32>
    %396 = arith.addf %393, %395 : vector<8x128xf32>
    %397 = vector.extract_strided_slice %396 {offsets = [0, 0], sizes = [8, 32], strides = [1, 1]} : vector<8x128xf32> to vector<8x32xf32>
    %398 = arith.negf %397 : vector<8x32xf32>
    %399 = math.exp %398 : vector<8x32xf32>
    %cst_108 = arith.constant 1.000000e+00 : f32
    %400 = vector.broadcast %cst_108 : f32 to vector<8x32xf32>
    %401 = arith.addf %400, %399 : vector<8x32xf32>
    %402 = arith.divf %400, %401 : vector<8x32xf32>
    %403 = vector.extract_strided_slice %396 {offsets = [0, 32], sizes = [8, 32], strides = [1, 1]} : vector<8x128xf32> to vector<8x32xf32>
    %404 = arith.negf %403 : vector<8x32xf32>
    %405 = math.exp %404 : vector<8x32xf32>
    %cst_109 = arith.constant 1.000000e+00 : f32
    %406 = vector.broadcast %cst_109 : f32 to vector<8x32xf32>
    %407 = arith.addf %406, %405 : vector<8x32xf32>
    %408 = arith.divf %406, %407 : vector<8x32xf32>
    %409 = vector.extract_strided_slice %396 {offsets = [0, 64], sizes = [8, 32], strides = [1, 1]} : vector<8x128xf32> to vector<8x32xf32>
    %410 = math.tanh %409 : vector<8x32xf32>
    %411 = vector.extract_strided_slice %396 {offsets = [0, 96], sizes = [8, 32], strides = [1, 1]} : vector<8x128xf32> to vector<8x32xf32>
    %412 = arith.negf %411 : vector<8x32xf32>
    %413 = math.exp %412 : vector<8x32xf32>
    %cst_110 = arith.constant 1.000000e+00 : f32
    %414 = vector.broadcast %cst_110 : f32 to vector<8x32xf32>
    %415 = arith.addf %414, %413 : vector<8x32xf32>
    %416 = arith.divf %414, %415 : vector<8x32xf32>
    %417 = arith.mulf %408, %355 : vector<8x32xf32>
    %418 = arith.mulf %402, %410 : vector<8x32xf32>
    %419 = arith.addf %417, %418 : vector<8x32xf32>
    %420 = math.tanh %419 : vector<8x32xf32>
    %421 = arith.mulf %416, %420 : vector<8x32xf32>
    %422 = arith.truncf %421 : vector<8x32xf32> to vector<8x32xbf16>
    %cst_111 = arith.constant dense<0.000000e+00> : vector<8x128xf32>
    %423 = tpu.matmul %422, %1, %cst_111 {dimension_numbers = #tpu.dot_dimension_numbers<[1], [0], [0], [1], [0, 0, 1, 1], [], []>} : vector<8x32xbf16>, vector<32x128xbf16>, vector<8x128xf32> -> vector<8x128xf32>
    %424 = vector.broadcast %2 : vector<1x128xf32> to vector<8x128xf32>
    %425 = arith.addf %423, %424 : vector<8x128xf32>
    %cst_112 = arith.constant dense<0xFF800000> : vector<8xf32>
    %426 = vector.multi_reduction <maximumf>, %425, %cst_112 [1] : vector<8x128xf32> to vector<8xf32>
    %427 = vector.shape_cast %426 : vector<8xf32> to vector<8x1xf32>
    %428 = vector.broadcast %427 : vector<8x1xf32> to vector<8x128xf32>
    %429 = arith.subf %425, %428 : vector<8x128xf32>
    %430 = math.exp %429 : vector<8x128xf32>
    %cst_113 = arith.constant dense<0.000000e+00> : vector<8xf32>
    %431 = vector.multi_reduction <add>, %430, %cst_113 [1] : vector<8x128xf32> to vector<8xf32>
    %432 = vector.shape_cast %431 : vector<8xf32> to vector<8x1xf32>
    %433 = math.log %432 : vector<8x1xf32>
    %434 = arith.addf %427, %433 : vector<8x1xf32>
    %435 = arith.index_cast %c6_i32 : i32 to index
    %c0_114 = arith.constant 0 : index
    %c0_115 = arith.constant 0 : index
    %436 = vector.load %arg2[%435, %c0_114, %c0_115] : memref<8x8x1xi32, #tpu.memory_space<vmem>>, vector<1x8x1xi32>
    %437 = vector.shape_cast %436 : vector<1x8x1xi32> to vector<8x1xi32>
    %438 = vector.broadcast %437 : vector<8x1xi32> to vector<8x128xi32>
    %439 = arith.cmpi eq, %3, %438 : vector<8x128xi32>
    %cst_116 = arith.constant 0.000000e+00 : f32
    %440 = vector.broadcast %cst_116 : f32 to vector<8x128xf32>
    %441 = arith.select %439, %425, %440 : vector<8x128xi1>, vector<8x128xf32>
    %cst_117 = arith.constant dense<0.000000e+00> : vector<8xf32>
    %442 = vector.multi_reduction <add>, %441, %cst_117 [1] : vector<8x128xf32> to vector<8xf32>
    %443 = vector.shape_cast %442 : vector<8xf32> to vector<8x1xf32>
    %444 = arith.subf %434, %443 : vector<8x1xf32>
    %445 = arith.index_cast %c6_i32 : i32 to index
    %c0_118 = arith.constant 0 : index
    %c0_119 = arith.constant 0 : index
    %446 = vector.load %arg3[%445, %c0_118, %c0_119] : memref<8x8x1xf32, #tpu.memory_space<vmem>>, vector<1x8x1xf32>
    %447 = vector.shape_cast %446 : vector<1x8x1xf32> to vector<8x1xf32>
    %448 = arith.mulf %444, %447 : vector<8x1xf32>
    %449 = vector.shape_cast %448 : vector<8x1xf32> to vector<1x8x1xf32>
    %cst_120 = arith.constant dense<0.000000e+00> : vector<1xf32>
    %450 = vector.multi_reduction <add>, %449, %cst_120 [1, 2] : vector<1x8x1xf32> to vector<1xf32>
    %451 = vector.shape_cast %450 : vector<1xf32> to vector<1x1x1xf32>
    %452 = vector.extract %451[0, 0, 0] : f32 from vector<1x1x1xf32>
    %453 = vector.broadcast %452 : f32 to vector<1x1xf32>
    %454 = arith.addf %390, %453 : vector<1x1xf32>
    %c7_i32 = arith.constant 7 : i32
    %455 = arith.index_cast %c7_i32 : i32 to index
    %c0_121 = arith.constant 0 : index
    %c0_122 = arith.constant 0 : index
    %456 = vector.load %arg1[%455, %c0_121, %c0_122] : memref<8x8x128xf32, #tpu.memory_space<vmem>>, vector<1x8x128xf32>
    %457 = vector.shape_cast %456 : vector<1x8x128xf32> to vector<8x128xf32>
    %458 = arith.truncf %421 : vector<8x32xf32> to vector<8x32xbf16>
    %cst_123 = arith.constant dense<0.000000e+00> : vector<8x128xf32>
    %459 = tpu.matmul %458, %0, %cst_123 {dimension_numbers = #tpu.dot_dimension_numbers<[1], [0], [0], [1], [0, 0, 1, 1], [], []>} : vector<8x32xbf16>, vector<32x128xbf16>, vector<8x128xf32> -> vector<8x128xf32>
    %460 = arith.addf %457, %459 : vector<8x128xf32>
    %461 = vector.extract_strided_slice %460 {offsets = [0, 0], sizes = [8, 32], strides = [1, 1]} : vector<8x128xf32> to vector<8x32xf32>
    %462 = arith.negf %461 : vector<8x32xf32>
    %463 = math.exp %462 : vector<8x32xf32>
    %cst_124 = arith.constant 1.000000e+00 : f32
    %464 = vector.broadcast %cst_124 : f32 to vector<8x32xf32>
    %465 = arith.addf %464, %463 : vector<8x32xf32>
    %466 = arith.divf %464, %465 : vector<8x32xf32>
    %467 = vector.extract_strided_slice %460 {offsets = [0, 32], sizes = [8, 32], strides = [1, 1]} : vector<8x128xf32> to vector<8x32xf32>
    %468 = arith.negf %467 : vector<8x32xf32>
    %469 = math.exp %468 : vector<8x32xf32>
    %cst_125 = arith.constant 1.000000e+00 : f32
    %470 = vector.broadcast %cst_125 : f32 to vector<8x32xf32>
    %471 = arith.addf %470, %469 : vector<8x32xf32>
    %472 = arith.divf %470, %471 : vector<8x32xf32>
    %473 = vector.extract_strided_slice %460 {offsets = [0, 64], sizes = [8, 32], strides = [1, 1]} : vector<8x128xf32> to vector<8x32xf32>
    %474 = math.tanh %473 : vector<8x32xf32>
    %475 = vector.extract_strided_slice %460 {offsets = [0, 96], sizes = [8, 32], strides = [1, 1]} : vector<8x128xf32> to vector<8x32xf32>
    %476 = arith.negf %475 : vector<8x32xf32>
    %477 = math.exp %476 : vector<8x32xf32>
    %cst_126 = arith.constant 1.000000e+00 : f32
    %478 = vector.broadcast %cst_126 : f32 to vector<8x32xf32>
    %479 = arith.addf %478, %477 : vector<8x32xf32>
    %480 = arith.divf %478, %479 : vector<8x32xf32>
    %481 = arith.mulf %472, %419 : vector<8x32xf32>
    %482 = arith.mulf %466, %474 : vector<8x32xf32>
    %483 = arith.addf %481, %482 : vector<8x32xf32>
    %484 = math.tanh %483 : vector<8x32xf32>
    %485 = arith.mulf %480, %484 : vector<8x32xf32>
    %486 = arith.truncf %485 : vector<8x32xf32> to vector<8x32xbf16>
    %cst_127 = arith.constant dense<0.000000e+00> : vector<8x128xf32>
    %487 = tpu.matmul %486, %1, %cst_127 {dimension_numbers = #tpu.dot_dimension_numbers<[1], [0], [0], [1], [0, 0, 1, 1], [], []>} : vector<8x32xbf16>, vector<32x128xbf16>, vector<8x128xf32> -> vector<8x128xf32>
    %488 = vector.broadcast %2 : vector<1x128xf32> to vector<8x128xf32>
    %489 = arith.addf %487, %488 : vector<8x128xf32>
    %cst_128 = arith.constant dense<0xFF800000> : vector<8xf32>
    %490 = vector.multi_reduction <maximumf>, %489, %cst_128 [1] : vector<8x128xf32> to vector<8xf32>
    %491 = vector.shape_cast %490 : vector<8xf32> to vector<8x1xf32>
    %492 = vector.broadcast %491 : vector<8x1xf32> to vector<8x128xf32>
    %493 = arith.subf %489, %492 : vector<8x128xf32>
    %494 = math.exp %493 : vector<8x128xf32>
    %cst_129 = arith.constant dense<0.000000e+00> : vector<8xf32>
    %495 = vector.multi_reduction <add>, %494, %cst_129 [1] : vector<8x128xf32> to vector<8xf32>
    %496 = vector.shape_cast %495 : vector<8xf32> to vector<8x1xf32>
    %497 = math.log %496 : vector<8x1xf32>
    %498 = arith.addf %491, %497 : vector<8x1xf32>
    %499 = arith.index_cast %c7_i32 : i32 to index
    %c0_130 = arith.constant 0 : index
    %c0_131 = arith.constant 0 : index
    %500 = vector.load %arg2[%499, %c0_130, %c0_131] : memref<8x8x1xi32, #tpu.memory_space<vmem>>, vector<1x8x1xi32>
    %501 = vector.shape_cast %500 : vector<1x8x1xi32> to vector<8x1xi32>
    %502 = vector.broadcast %501 : vector<8x1xi32> to vector<8x128xi32>
    %503 = arith.cmpi eq, %3, %502 : vector<8x128xi32>
    %cst_132 = arith.constant 0.000000e+00 : f32
    %504 = vector.broadcast %cst_132 : f32 to vector<8x128xf32>
    %505 = arith.select %503, %489, %504 : vector<8x128xi1>, vector<8x128xf32>
    %cst_133 = arith.constant dense<0.000000e+00> : vector<8xf32>
    %506 = vector.multi_reduction <add>, %505, %cst_133 [1] : vector<8x128xf32> to vector<8xf32>
    %507 = vector.shape_cast %506 : vector<8xf32> to vector<8x1xf32>
    %508 = arith.subf %498, %507 : vector<8x1xf32>
    %509 = arith.index_cast %c7_i32 : i32 to index
    %c0_134 = arith.constant 0 : index
    %c0_135 = arith.constant 0 : index
    %510 = vector.load %arg3[%509, %c0_134, %c0_135] : memref<8x8x1xf32, #tpu.memory_space<vmem>>, vector<1x8x1xf32>
    %511 = vector.shape_cast %510 : vector<1x8x1xf32> to vector<8x1xf32>
    %512 = arith.mulf %508, %511 : vector<8x1xf32>
    %513 = vector.shape_cast %512 : vector<8x1xf32> to vector<1x8x1xf32>
    %cst_136 = arith.constant dense<0.000000e+00> : vector<1xf32>
    %514 = vector.multi_reduction <add>, %513, %cst_136 [1, 2] : vector<1x8x1xf32> to vector<1xf32>
    %515 = vector.shape_cast %514 : vector<1xf32> to vector<1x1x1xf32>
    %516 = vector.extract %515[0, 0, 0] : f32 from vector<1x1x1xf32>
    %517 = vector.broadcast %516 : f32 to vector<1x1xf32>
    %518 = arith.addf %454, %517 : vector<1x1xf32>
    %c8_i32 = arith.constant 8 : i32
    %c0_137 = arith.constant 0 : index
    %c0_138 = arith.constant 0 : index
    %c0_139 = arith.constant 0 : index
    %519 = vector.load %arg9[%c0_137, %c0_138, %c0_139] : memref<1x1x1xf32, #tpu.memory_space<vmem>>, vector<1x1x1xf32>
    %520 = vector.shape_cast %519 : vector<1x1x1xf32> to vector<1x1xf32>
    %521 = vector.shape_cast %518 : vector<1x1xf32> to vector<1x1x1xf32>
    tpu.vector_store %arg9[%c0_137, %c0_138, %c0_139], %521 {strides = array<i32>} : memref<1x1x1xf32, #tpu.memory_space<vmem>>, vector<1x1x1xf32>,
    return
  }
  func.func @transform_0(%arg0: i32) -> (i32, i32, i32) {
    %c0_i32 = arith.constant 0 : i32
    %c0_i32_0 = arith.constant 0 : i32
    %c0_i32_1 = arith.constant 0 : i32
    return %c0_i32, %arg0, %c0_i32_0 : i32, i32, i32
  }
  func.func @transform_1(%arg0: i32) -> (i32, i32, i32) {
    %c0_i32 = arith.constant 0 : i32
    %c0_i32_0 = arith.constant 0 : i32
    %c0_i32_1 = arith.constant 0 : i32
    return %c0_i32, %arg0, %c0_i32_0 : i32, i32, i32
  }
  func.func @transform_2(%arg0: i32) -> (i32, i32, i32) {
    %c0_i32 = arith.constant 0 : i32
    %c0_i32_0 = arith.constant 0 : i32
    %c0_i32_1 = arith.constant 0 : i32
    return %c0_i32, %arg0, %c0_i32_0 : i32, i32, i32
  }
  func.func @transform_3(%arg0: i32) -> (i32, i32) {
    %c0_i32 = arith.constant 0 : i32
    %c0_i32_0 = arith.constant 0 : i32
    %c0_i32_1 = arith.constant 0 : i32
    return %c0_i32, %c0_i32_0 : i32, i32
  }
  func.func @transform_4(%arg0: i32) -> (i32, i32) {
    %c0_i32 = arith.constant 0 : i32
    %c0_i32_0 = arith.constant 0 : i32
    return %arg0, %c0_i32 : i32, i32
  }
  func.func @transform_5(%arg0: i32) -> (i32, i32) {
    %c0_i32 = arith.constant 0 : i32
    %c0_i32_0 = arith.constant 0 : i32
    return %arg0, %c0_i32 : i32, i32
  }
  func.func @transform_6(%arg0: i32) -> (i32, i32) {
    %c0_i32 = arith.constant 0 : i32
    %c0_i32_0 = arith.constant 0 : i32
    %c0_i32_1 = arith.constant 0 : i32
    return %c0_i32, %c0_i32_0 : i32, i32
  }
  func.func @transform_7(%arg0: i32) -> (i32, i32) {
    %c0_i32 = arith.constant 0 : i32
    %c0_i32_0 = arith.constant 0 : i32
    %c0_i32_1 = arith.constant 0 : i32
    return %c0_i32, %c0_i32_0 : i32, i32
  }
  func.func @transform_8(%arg0: i32) -> (i32, i32, i32) {
    %c0_i32 = arith.constant 0 : i32
    %c0_i32_0 = arith.constant 0 : i32
    %c0_i32_1 = arith.constant 0 : i32
    return %arg0, %c0_i32, %c0_i32_0 : i32, i32, i32
  }
}

</mosaic_0001>

<llo_original>
// kernel: lstm_decoder_loss.1
$region0: #{lstm_decoder_loss.1}
  #allocation0 [shape = 'u32[]', space=smem, size = 0x4, offset = 0x4, fixed_abs, tag = 'smem constant byte address 0x4 - core index']
  #allocation1 [shape = 'u32[144,128]{1,0:T(1,128)}', space=vmem, size = 0x12000, scoped, tag = 'internal scratch']
  %s0 = inlined_call_operand.vmem [shape: f32[8,8,128], index: 0, kind: input, shape index: {}]
  %s1 = inlined_call_operand.vmem [shape: s32[8,8,1], index: 1, kind: input, shape index: {}]
  %s2 = inlined_call_operand.vmem [shape: f32[8,8,1], index: 2, kind: input, shape index: {}]
  %s3 = inlined_call_operand.vmem [shape: bf16[32,128], index: 3, kind: input, shape index: {}]
  %s4 = inlined_call_operand.vmem [shape: f32[8,32], index: 4, kind: input, shape index: {}]
  %s5 = inlined_call_operand.vmem [shape: f32[8,32], index: 5, kind: input, shape index: {}]
  %s6 = inlined_call_operand.vmem [shape: bf16[32,128], index: 6, kind: input, shape index: {}]
  %s7 = inlined_call_operand.vmem [shape: f32[1,128], index: 7, kind: input, shape index: {}]
  %s8 = inlined_call_operand.hbm [shape: f32[1,1,1], index: 8, kind: output, shape index: {}]
  %s9 = sld [smem:[#allocation0]]
  $region42: #{lstm_decoder_loss.1} parent=0
    _
  %s11 = ssub.s32 1, %s9
  %s12 = scalar_select 0, %s11, %s9
  $region1: #{lstm_decoder_loss.1} parent=0
    #allocation2 [shape = 'u8[512]{0}', space=vmem, size = 0x400, scoped, tag = 'output window, operand 0, single buffered']
    #allocation3 [shape = 's32[1]{0}', space=sflag, size = 0x4, scoped, tag = 'scoped memory for lstm_decoder_loss.1']
    %13 = vsyncpa [#allocation3], 0
    // Predicated region
    $region2: #{lstm_decoder_loss.1} parent=1 // pred_check
      _
    $region3: #{lstm_decoder_loss.1} parent=1 // pred_check_branch
      %15 = sbr.rel (0) target = $region5
    $region4: #{lstm_decoder_loss.1} parent=1 // pred_region
      _
    $region5: #{lstm_decoder_loss.1} parent=1 // pred_fallthru
      _
    // Predicated region
    $region6: #{lstm_decoder_loss.1} parent=1 // pred_check
      _
    $region7: #{lstm_decoder_loss.1} parent=1 // pred_check_branch
      %17 = sbr.rel (0) target = $region9
    $region8: #{lstm_decoder_loss.1} parent=1 // pred_region
      _
    $region9: #{lstm_decoder_loss.1} parent=1 // pred_fallthru
      _
    // Predicated region
    $region10: #{lstm_decoder_loss.1} parent=1 // pred_check
      _
    $region11: #{lstm_decoder_loss.1} parent=1 // pred_check_branch
      %19 = sbr.rel (0) target = $region13
    $region12: #{lstm_decoder_loss.1} parent=1 // pred_region
      _
    $region13: #{lstm_decoder_loss.1} parent=1 // pred_fallthru
      _
    // Predicated region
    $region14: #{lstm_decoder_loss.1} parent=1 // pred_check
      _
    $region15: #{lstm_decoder_loss.1} parent=1 // pred_check_branch
      %21 = sbr.rel (0) target = $region17
    $region16: #{lstm_decoder_loss.1} parent=1 // pred_region
      _
    $region17: #{lstm_decoder_loss.1} parent=1 // pred_fallthru
      _
    // Predicated region
    $region18: #{lstm_decoder_loss.1} parent=1 // pred_check
      _
    $region19: #{lstm_decoder_loss.1} parent=1 // pred_check_branch
      %23 = sbr.rel (0) target = $region21
    $region20: #{lstm_decoder_loss.1} parent=1 // pred_region
      _
    $region21: #{lstm_decoder_loss.1} parent=1 // pred_fallthru
      _
    // Predicated region
    $region22: #{lstm_decoder_loss.1} parent=1 // pred_check
      _
    $region23: #{lstm_decoder_loss.1} parent=1 // pred_check_branch
      %25 = sbr.rel (0) target = $region25
    $region24: #{lstm_decoder_loss.1} parent=1 // pred_region
      _
    $region25: #{lstm_decoder_loss.1} parent=1 // pred_fallthru
      _
    // Predicated region
    $region26: #{lstm_decoder_loss.1} parent=1 // pred_check
      _
    $region27: #{lstm_decoder_loss.1} parent=1 // pred_check_branch
      %27 = sbr.rel (0) target = $region29
    $region28: #{lstm_decoder_loss.1} parent=1 // pred_region
      _
    $region29: #{lstm_decoder_loss.1} parent=1 // pred_fallthru
      _
    // Predicated region
    $region30: #{lstm_decoder_loss.1} parent=1 // pred_check
      _
    $region31: #{lstm_decoder_loss.1} parent=1 // pred_check_branch
      %29 = sbr.rel (0) target = $region33
    $region32: #{lstm_decoder_loss.1} parent=1 // pred_region
      _
    $region33: #{lstm_decoder_loss.1} parent=1 // pred_fallthru
      _
    %v31 = vld [vmem:[%s3] sm:$0xf]
    %v32 = vld [vmem:[%s3 + $0x4] sm:$0xf]
    %v33 = vld [vmem:[%s3 + $0x8] sm:$0xf]
    %v34 = vld [vmem:[%s3 + $0xc] sm:$0xf]
    %v35 = vld [vmem:[%s6] sm:$0xf]
    %v36 = vld [vmem:[%s6 + $0x4] sm:$0xf]
    %v37 = vld [vmem:[%s6 + $0x8] sm:$0xf]
    %v38 = vld [vmem:[%s6 + $0xc] sm:$0xf]
    %v39 = vld [vmem:[%s7] sm:$0x1]
    %v40 = vlaneseq
    %v41 = vand.u32 %v40, 127
    %v42 = vld [vmem:[%s4] sm:$0xff]
    %v43 = vld [vmem:[%s5] sm:$0xff]
    %v44 = vld [vmem:[%s0] sm:$0xff]
    %v45 = vpack.c.bf16 %v42, %v42
    %v50 = vunpack.c.l.b16 %v31
    %v51 = vunpack.c.l.b16 %v32
    %v52 = vunpack.c.l.b16 %v33
    %v53 = vunpack.c.l.b16 %v34
    %v54 = vpack.c.b16 %v51, %v50
    %v55 = vpack.c.b16 %v53, %v52
    %vm58 = vcmask 261120
    %v60 = vsel %vm58, %v45, 0
    %62 = vmatprep.subr.bf16.mxu0 0
    %63 = vmatpush1.bf16.msra.mxu0 %v54
    %64 = vmatprep.subr.bf16.mxu0 0
    %65 = vmatpush1.bf16.msra.mxu0 %v55
    %66 = vmatprep.subr.bf16.mxu0 0
    %67 = vmatpush1.bf16.msra.mxu0 0
    %68 = vmatprep.subr.bf16.mxu0 0
    %69 = vmatpush1.bf16.msra.mxu0 0
    %70 = vmatprep.subr.bf16.mxu0 0
    %71 = vmatpush1.bf16.msra.mxu0 0
    %72 = vmatprep.subr.bf16.mxu0 0
    %73 = vmatpush1.bf16.msra.mxu0 0
    %74 = vmatprep.subr.bf16.mxu0 0
    %75 = vmatpush1.bf16.msra.mxu0 0
    %76 = vmatprep.subr.bf16.mxu0 0
    %77 = vmatpush1.bf16.msra.mxu0 0
    %78 = vmatprep.subr.bf16.mxu0 0
    %79 = vmatpush1.bf16.msra.mxu0 0
    %80 = vmatprep.subr.bf16.mxu0 0
    %81 = vmatpush1.bf16.msra.mxu0 0
    %82 = vmatprep.subr.bf16.mxu0 0
    %83 = vmatpush1.bf16.msra.mxu0 0
    %84 = vmatprep.subr.bf16.mxu0 0
    %85 = vmatpush1.bf16.msra.mxu0 0
    %86 = vmatprep.subr.bf16.mxu0 0
    %87 = vmatpush1.bf16.msra.mxu0 0
    %88 = vmatprep.subr.bf16.mxu0 0
    %89 = vmatpush1.bf16.msra.mxu0 0
    %90 = vmatprep.subr.bf16.mxu0 0
    %91 = vmatpush1.bf16.msra.mxu0 0
    %92 = vmatprep.subr.bf16.mxu0 0
    %93 = vmatpush1.bf16.msra.mxu0 0
    %94 = vmatprep.mubr.bf16.mxu0 0
    %95 = vmatmul.mubr.bf16.gmra.mrb[0].mxu0 %v60
    %v96 = vpop.f32.mrb[0].mxu0
    %v97 = vadd.f32 0.0, %v96
    %v98 = vpop.f32.mrb[0].mxu0
    %v99 = vpop.f32.mrb[0].mxu0
    %v100 = vpop.f32.mrb[0].mxu0
    %101 = vdwg.mxu0
    %v102 = vadd.f32 %v44, %v97
    %v103 = vxor.u32 %v102, 2147483648
    %v104 = vmul.f32 %v103, 1.442695
    %v105 = vpow.pop %v104
    %v106 = vadd.f32 %v105, 1.0
    %v107 = vrcp.pop %v106
    %v108 = vmul.f32 1.0, %v107
    %v109 = vtanh.pop %v102
    %111 = vrot.lane.b32.xlu0 %v43, 32
    %v112 = vpop.permute.xlu0 %111
    %v114 = vmul.f32 %v108, %v112
    %116 = vrot.lane.b32.xlu0 %v109, 64
    %v117 = vpop.permute.xlu0 %116
    %v119 = vmul.f32 %v108, %v117
    %121 = vrot.lane.b32.xlu0 %v119, 32
    %v122 = vpop.permute.xlu0 %121
    %v124 = vadd.f32 %v114, %v122
    %v125 = vtanh.pop %v124
    %127 = vrot.lane.b32.xlu0 %v125, 64
    %v128 = vpop.permute.xlu0 %127
    %v130 = vmul.f32 %v108, %v128
    %v131 = vpack.c.bf16 %v130, %v130
    %v133 = vlaneseq
    %v134 = vshrl.u32 %v133, 7
    %v135 = vsub.s32 0, %v134
    %v136 = vrot.slane %v39, %v135
    %139 = vrot.lane.b32.xlu0 %v131, 32
    %v140 = vpop.permute.xlu0 %139
    %v145 = vunpack.c.l.b16 %v35
    %v146 = vunpack.c.l.b16 %v36
    %v147 = vunpack.c.l.b16 %v37
    %v148 = vunpack.c.l.b16 %v38
    %v149 = vpack.c.b16 %v146, %v145
    %v150 = vpack.c.b16 %v148, %v147
    %v154 = vsel %vm58, %v140, 0
    %156 = vmatprep.subr.bf16.mxu0 0
    %157 = vmatpush1.bf16.msra.mxu0 %v149
    %158 = vmatprep.subr.bf16.mxu0 0
    %159 = vmatpush1.bf16.msra.mxu0 %v150
    %160 = vmatprep.subr.bf16.mxu0 0
    %161 = vmatpush1.bf16.msra.mxu0 0
    %162 = vmatprep.subr.bf16.mxu0 0
    %163 = vmatpush1.bf16.msra.mxu0 0
    %164 = vmatprep.subr.bf16.mxu0 0
    %165 = vmatpush1.bf16.msra.mxu0 0
    %166 = vmatprep.subr.bf16.mxu0 0
    %167 = vmatpush1.bf16.msra.mxu0 0
    %168 = vmatprep.subr.bf16.mxu0 0
    %169 = vmatpush1.bf16.msra.mxu0 0
    %170 = vmatprep.subr.bf16.mxu0 0
    %171 = vmatpush1.bf16.msra.mxu0 0
    %172 = vmatprep.subr.bf16.mxu0 0
    %173 = vmatpush1.bf16.msra.mxu0 0
    %174 = vmatprep.subr.bf16.mxu0 0
    %175 = vmatpush1.bf16.msra.mxu0 0
    %176 = vmatprep.subr.bf16.mxu0 0
    %177 = vmatpush1.bf16.msra.mxu0 0
    %178 = vmatprep.subr.bf16.mxu0 0
    %179 = vmatpush1.bf16.msra.mxu0 0
    %180 = vmatprep.subr.bf16.mxu0 0
    %181 = vmatpush1.bf16.msra.mxu0 0
    %182 = vmatprep.subr.bf16.mxu0 0
    %183 = vmatpush1.bf16.msra.mxu0 0
    %184 = vmatprep.subr.bf16.mxu0 0
    %185 = vmatpush1.bf16.msra.mxu0 0
    %186 = vmatprep.subr.bf16.mxu0 0
    %187 = vmatpush1.bf16.msra.mxu0 0
    %188 = vmatprep.mubr.bf16.mxu0 0
    %189 = vmatmul.mubr.bf16.gmra.mrb[0].mxu0 %v154
    %v190 = vpop.f32.mrb[0].mxu0
    %v191 = vadd.f32 %v136, %v190
    %v192 = vpop.f32.mrb[0].mxu0
    %v193 = vpop.f32.mrb[0].mxu0
    %v194 = vpop.f32.mrb[0].mxu0
    %195 = vdwg.mxu0
    %196 = vmax.xlane.f32.xlu0 %v191
    %v197 = vpop.xlane.xlu0 %196
    %v198 = vsub.f32 %v191, %v197
    %v199 = vmul.f32 %v198, 1.442695
    %v200 = vpow.pop %v199
    %201 = vadd.xlane.f32.xlu0 %v200
    %v202 = vpop.xlane.xlu0 %201
    %v203 = vlog2.pop %v202
    %v204 = vmul.f32 %v203, 0.6931472
    %v205 = vadd.f32 %v197, %v204
    %v206 = vld [vmem:[%s1] sm:$0xff]
    %207 = vset.pattern.permute.xlu0 0
    %208 = vperm.xlu0 %207, %v206
    %v209 = vpop.permute.xlu0 %208
    %vm210 = vcmp.eq.s32.totalorder %v41, %v209
    %v211 = vsel %vm210, %v191, 0.0
    %212 = vadd.xlane.f32.xlu0 %v211
    %v213 = vpop.xlane.xlu0 %212
    %v214 = vsub.f32 %v205, %v213
    %v215 = vld [vmem:[%s2] sm:$0xff]
    %v216 = vmul.f32 %v214, %v215
    %vm217 = vcmask 7168
    %v218 = vsel %vm217, %v216, 0.0
    %219 = vadd.xlane.f32.xlu0 %v218
    %v220 = vpop.xlane.xlu0 %219
    %v221 = vrot.slane %v220, 4
    %v222 = vadd.f32 %v220, %v221
    %v223 = vrot.slane %v222, 2
    %v224 = vadd.f32 %v222, %v223
    %v225 = vrot.slane %v224, 1
    %v226 = vadd.f32 %v224, %v225
    %s227 = vtos %v226
    %v228 = vstv %s227
    %v229 = vadd.f32 %v228, 0.0
    %s230 = scalar_lea.vmem %s0, 8
    %v231 = vld [vmem:[%s230] sm:$0xff]
    %232 = vmatprep.subr.bf16.mxu0 0
    %233 = vmatpush1.bf16.msra.mxu0 %v54
    %234 = vmatprep.subr.bf16.mxu0 0
    %235 = vmatpush1.bf16.msra.mxu0 %v55
    %236 = vmatprep.subr.bf16.mxu0 0
    %237 = vmatpush1.bf16.msra.mxu0 0
    %238 = vmatprep.subr.bf16.mxu0 0
    %239 = vmatpush1.bf16.msra.mxu0 0
    %240 = vmatprep.subr.bf16.mxu0 0
    %241 = vmatpush1.bf16.msra.mxu0 0
    %242 = vmatprep.subr.bf16.mxu0 0
    %243 = vmatpush1.bf16.msra.mxu0 0
    %244 = vmatprep.subr.bf16.mxu0 0
    %245 = vmatpush1.bf16.msra.mxu0 0
    %246 = vmatprep.subr.bf16.mxu0 0
    %247 = vmatpush1.bf16.msra.mxu0 0
    %248 = vmatprep.subr.bf16.mxu0 0
    %249 = vmatpush1.bf16.msra.mxu0 0
    %250 = vmatprep.subr.bf16.mxu0 0
    %251 = vmatpush1.bf16.msra.mxu0 0
    %252 = vmatprep.subr.bf16.mxu0 0
    %253 = vmatpush1.bf16.msra.mxu0 0
    %254 = vmatprep.subr.bf16.mxu0 0
    %255 = vmatpush1.bf16.msra.mxu0 0
    %256 = vmatprep.subr.bf16.mxu0 0
    %257 = vmatpush1.bf16.msra.mxu0 0
    %258 = vmatprep.subr.bf16.mxu0 0
    %259 = vmatpush1.bf16.msra.mxu0 0
    %260 = vmatprep.subr.bf16.mxu0 0
    %261 = vmatpush1.bf16.msra.mxu0 0
    %262 = vmatprep.subr.bf16.mxu0 0
    %263 = vmatpush1.bf16.msra.mxu0 0
    %264 = vmatprep.mubr.bf16.mxu0 0
    %265 = vmatmul.mubr.bf16.gmra.mrb[0].mxu0 %v154
    %v266 = vpop.f32.mrb[0].mxu0
    %v267 = vadd.f32 0.0, %v266
    %v268 = vpop.f32.mrb[0].mxu0
    %v269 = vpop.f32.mrb[0].mxu0
    %v270 = vpop.f32.mrb[0].mxu0
    %271 = vdwg.mxu0
    %v272 = vadd.f32 %v231, %v267
    %v273 = vxor.u32 %v272, 2147483648
    %v274 = vmul.f32 %v273, 1.442695
    %v275 = vpow.pop %v274
    %v276 = vadd.f32 %v275, 1.0
    %v277 = vrcp.pop %v276
    %v278 = vmul.f32 1.0, %v277
    %v279 = vtanh.pop %v272
    %v280 = vmul.f32 %v278, %v124
    %282 = vrot.lane.b32.xlu0 %v279, 64
    %v283 = vpop.permute.xlu0 %282
    %v285 = vmul.f32 %v278, %v283
    %287 = vrot.lane.b32.xlu0 %v285, 32
    %v288 = vpop.permute.xlu0 %287
    %v290 = vadd.f32 %v280, %v288
    %v291 = vtanh.pop %v290
    %293 = vrot.lane.b32.xlu0 %v291, 64
    %v294 = vpop.permute.xlu0 %293
    %v296 = vmul.f32 %v278, %v294
    %v297 = vpack.c.bf16 %v296, %v296
    %299 = vrot.lane.b32.xlu0 %v297, 32
    %v300 = vpop.permute.xlu0 %299
    %v302 = vsel %vm58, %v300, 0
    %304 = vmatprep.subr.bf16.mxu0 0
    %305 = vmatpush1.bf16.msra.mxu0 %v149
    %306 = vmatprep.subr.bf16.mxu0 0
    %307 = vmatpush1.bf16.msra.mxu0 %v150
    %308 = vmatprep.subr.bf16.mxu0 0
    %309 = vmatpush1.bf16.msra.mxu0 0
    %310 = vmatprep.subr.bf16.mxu0 0
    %311 = vmatpush1.bf16.msra.mxu0 0
    %312 = vmatprep.subr.bf16.mxu0 0
    %313 = vmatpush1.bf16.msra.mxu0 0
    %314 = vmatprep.subr.bf16.mxu0 0
    %315 = vmatpush1.bf16.msra.mxu0 0
    %316 = vmatprep.subr.bf16.mxu0 0
    %317 = vmatpush1.bf16.msra.mxu0 0
    %318 = vmatprep.subr.bf16.mxu0 0
    %319 = vmatpush1.bf16.msra.mxu0 0
    %320 = vmatprep.subr.bf16.mxu0 0
    %321 = vmatpush1.bf16.msra.mxu0 0
    %322 = vmatprep.subr.bf16.mxu0 0
    %323 = vmatpush1.bf16.msra.mxu0 0
    %324 = vmatprep.subr.bf16.mxu0 0
    %325 = vmatpush1.bf16.msra.mxu0 0
    %326 = vmatprep.subr.bf16.mxu0 0
    %327 = vmatpush1.bf16.msra.mxu0 0
    %328 = vmatprep.subr.bf16.mxu0 0
    %329 = vmatpush1.bf16.msra.mxu0 0
    %330 = vmatprep.subr.bf16.mxu0 0
    %331 = vmatpush1.bf16.msra.mxu0 0
    %332 = vmatprep.subr.bf16.mxu0 0
    %333 = vmatpush1.bf16.msra.mxu0 0
    %334 = vmatprep.subr.bf16.mxu0 0
    %335 = vmatpush1.bf16.msra.mxu0 0
    %336 = vmatprep.mubr.bf16.mxu0 0
    %337 = vmatmul.mubr.bf16.gmra.mrb[0].mxu0 %v302
    %v338 = vpop.f32.mrb[0].mxu0
    %v339 = vadd.f32 %v136, %v338
    %v340 = vpop.f32.mrb[0].mxu0
    %v341 = vpop.f32.mrb[0].mxu0
    %v342 = vpop.f32.mrb[0].mxu0
    %343 = vdwg.mxu0
    %344 = vmax.xlane.f32.xlu0 %v339
    %v345 = vpop.xlane.xlu0 %344
    %v346 = vsub.f32 %v339, %v345
    %v347 = vmul.f32 %v346, 1.442695
    %v348 = vpow.pop %v347
    %349 = vadd.xlane.f32.xlu0 %v348
    %v350 = vpop.xlane.xlu0 %349
    %v351 = vlog2.pop %v350
    %v352 = vmul.f32 %v351, 0.6931472
    %v353 = vadd.f32 %v345, %v352
    %s354 = scalar_lea.vmem %s1, 8
    %v355 = vld [vmem:[%s354] sm:$0xff]
    %356 = vset.pattern.permute.xlu0 0
    %357 = vperm.xlu0 %356, %v355
    %v358 = vpop.permute.xlu0 %357
    %vm359 = vcmp.eq.s32.totalorder %v41, %v358
    %v360 = vsel %vm359, %v339, 0.0
    %361 = vadd.xlane.f32.xlu0 %v360
    %v362 = vpop.xlane.xlu0 %361
    %v363 = vsub.f32 %v353, %v362
    %s364 = scalar_lea.vmem %s2, 8
    %v365 = vld [vmem:[%s364] sm:$0xff]
    %v366 = vmul.f32 %v363, %v365
    %v367 = vsel %vm217, %v366, 0.0
    %368 = vadd.xlane.f32.xlu0 %v367
    %v369 = vpop.xlane.xlu0 %368
    %v370 = vrot.slane %v369, 4
    %v371 = vadd.f32 %v369, %v370
    %v372 = vrot.slane %v371, 2
    %v373 = vadd.f32 %v371, %v372
    %v374 = vrot.slane %v373, 1
    %v375 = vadd.f32 %v373, %v374
    %s376 = vtos %v375
    %v377 = vstv %s376
    %v378 = vadd.f32 %v229, %v377
    %s379 = scalar_lea.vmem %s0, 16
    %v380 = vld [vmem:[%s379] sm:$0xff]
    %381 = vmatprep.subr.bf16.mxu0 0
    %382 = vmatpush1.bf16.msra.mxu0 %v54
    %383 = vmatprep.subr.bf16.mxu0 0
    %384 = vmatpush1.bf16.msra.mxu0 %v55
    %385 = vmatprep.subr.bf16.mxu0 0
    %386 = vmatpush1.bf16.msra.mxu0 0
    %387 = vmatprep.subr.bf16.mxu0 0
    %388 = vmatpush1.bf16.msra.mxu0 0
    %389 = vmatprep.subr.bf16.mxu0 0
    %390 = vmatpush1.bf16.msra.mxu0 0
    %391 = vmatprep.subr.bf16.mxu0 0
    %392 = vmatpush1.bf16.msra.mxu0 0
    %393 = vmatprep.subr.bf16.mxu0 0
    %394 = vmatpush1.bf16.msra.mxu0 0
    %395 = vmatprep.subr.bf16.mxu0 0
    %396 = vmatpush1.bf16.msra.mxu0 0
    %397 = vmatprep.subr.bf16.mxu0 0
    %398 = vmatpush1.bf16.msra.mxu0 0
    %399 = vmatprep.subr.bf16.mxu0 0
    %400 = vmatpush1.bf16.msra.mxu0 0
    %401 = vmatprep.subr.bf16.mxu0 0
    %402 = vmatpush1.bf16.msra.mxu0 0
    %403 = vmatprep.subr.bf16.mxu0 0
    %404 = vmatpush1.bf16.msra.mxu0 0
    %405 = vmatprep.subr.bf16.mxu0 0
    %406 = vmatpush1.bf16.msra.mxu0 0
    %407 = vmatprep.subr.bf16.mxu0 0
    %408 = vmatpush1.bf16.msra.mxu0 0
    %409 = vmatprep.subr.bf16.mxu0 0
    %410 = vmatpush1.bf16.msra.mxu0 0
    %411 = vmatprep.subr.bf16.mxu0 0
    %412 = vmatpush1.bf16.msra.mxu0 0
    %413 = vmatprep.mubr.bf16.mxu0 0
    %414 = vmatmul.mubr.bf16.gmra.mrb[0].mxu0 %v302
    %v415 = vpop.f32.mrb[0].mxu0
    %v416 = vadd.f32 0.0, %v415
    %v417 = vpop.f32.mrb[0].mxu0
    %v418 = vpop.f32.mrb[0].mxu0
    %v419 = vpop.f32.mrb[0].mxu0
    %420 = vdwg.mxu0
    %v421 = vadd.f32 %v380, %v416
    %v422 = vxor.u32 %v421, 2147483648
    %v423 = vmul.f32 %v422, 1.442695
    %v424 = vpow.pop %v423
    %v425 = vadd.f32 %v424, 1.0
    %v426 = vrcp.pop %v425
    %v427 = vmul.f32 1.0, %v426
    %v428 = vtanh.pop %v421
    %v429 = vmul.f32 %v427, %v290
    %431 = vrot.lane.b32.xlu0 %v428, 64
    %v432 = vpop.permute.xlu0 %431
    %v434 = vmul.f32 %v427, %v432
    %436 = vrot.lane.b32.xlu0 %v434, 32
    %v437 = vpop.permute.xlu0 %436
    %v439 = vadd.f32 %v429, %v437
    %v440 = vtanh.pop %v439
    %442 = vrot.lane.b32.xlu0 %v440, 64
    %v443 = vpop.permute.xlu0 %442
    %v445 = vmul.f32 %v427, %v443
    %v446 = vpack.c.bf16 %v445, %v445
    %448 = vrot.lane.b32.xlu0 %v446, 32
    %v449 = vpop.permute.xlu0 %448
    %v451 = vsel %vm58, %v449, 0
    %453 = vmatprep.subr.bf16.mxu0 0
    %454 = vmatpush1.bf16.msra.mxu0 %v149
    %455 = vmatprep.subr.bf16.mxu0 0
    %456 = vmatpush1.bf16.msra.mxu0 %v150
    %457 = vmatprep.subr.bf16.mxu0 0
    %458 = vmatpush1.bf16.msra.mxu0 0
    %459 = vmatprep.subr.bf16.mxu0 0
    %460 = vmatpush1.bf16.msra.mxu0 0
    %461 = vmatprep.subr.bf16.mxu0 0
    %462 = vmatpush1.bf16.msra.mxu0 0
    %463 = vmatprep.subr.bf16.mxu0 0
    %464 = vmatpush1.bf16.msra.mxu0 0
    %465 = vmatprep.subr.bf16.mxu0 0
    %466 = vmatpush1.bf16.msra.mxu0 0
    %467 = vmatprep.subr.bf16.mxu0 0
    %468 = vmatpush1.bf16.msra.mxu0 0
    %469 = vmatprep.subr.bf16.mxu0 0
    %470 = vmatpush1.bf16.msra.mxu0 0
    %471 = vmatprep.subr.bf16.mxu0 0
    %472 = vmatpush1.bf16.msra.mxu0 0
    %473 = vmatprep.subr.bf16.mxu0 0
    %474 = vmatpush1.bf16.msra.mxu0 0
    %475 = vmatprep.subr.bf16.mxu0 0
    %476 = vmatpush1.bf16.msra.mxu0 0
    %477 = vmatprep.subr.bf16.mxu0 0
    %478 = vmatpush1.bf16.msra.mxu0 0
    %479 = vmatprep.subr.bf16.mxu0 0
    %480 = vmatpush1.bf16.msra.mxu0 0
    %481 = vmatprep.subr.bf16.mxu0 0
    %482 = vmatpush1.bf16.msra.mxu0 0
    %483 = vmatprep.subr.bf16.mxu0 0
    %484 = vmatpush1.bf16.msra.mxu0 0
    %485 = vmatprep.mubr.bf16.mxu0 0
    %486 = vmatmul.mubr.bf16.gmra.mrb[0].mxu0 %v451
    %v487 = vpop.f32.mrb[0].mxu0
    %v488 = vadd.f32 %v136, %v487
    %v489 = vpop.f32.mrb[0].mxu0
    %v490 = vpop.f32.mrb[0].mxu0
    %v491 = vpop.f32.mrb[0].mxu0
    %492 = vdwg.mxu0
    %493 = vmax.xlane.f32.xlu0 %v488
    %v494 = vpop.xlane.xlu0 %493
    %v495 = vsub.f32 %v488, %v494
    %v496 = vmul.f32 %v495, 1.442695
    %v497 = vpow.pop %v496
    %498 = vadd.xlane.f32.xlu0 %v497
    %v499 = vpop.xlane.xlu0 %498
    %v500 = vlog2.pop %v499
    %v501 = vmul.f32 %v500, 0.6931472
    %v502 = vadd.f32 %v494, %v501
    %s503 = scalar_lea.vmem %s1, 16
    %v504 = vld [vmem:[%s503] sm:$0xff]
    %505 = vset.pattern.permute.xlu0 0
    %506 = vperm.xlu0 %505, %v504
    %v507 = vpop.permute.xlu0 %506
    %vm508 = vcmp.eq.s32.totalorder %v41, %v507
    %v509 = vsel %vm508, %v488, 0.0
    %510 = vadd.xlane.f32.xlu0 %v509
    %v511 = vpop.xlane.xlu0 %510
    %v512 = vsub.f32 %v502, %v511
    %s513 = scalar_lea.vmem %s2, 16
    %v514 = vld [vmem:[%s513] sm:$0xff]
    %v515 = vmul.f32 %v512, %v514
    %v516 = vsel %vm217, %v515, 0.0
    %517 = vadd.xlane.f32.xlu0 %v516
    %v518 = vpop.xlane.xlu0 %517
    %v519 = vrot.slane %v518, 4
    %v520 = vadd.f32 %v518, %v519
    %v521 = vrot.slane %v520, 2
    %v522 = vadd.f32 %v520, %v521
    %v523 = vrot.slane %v522, 1
    %v524 = vadd.f32 %v522, %v523
    %s525 = vtos %v524
    %v526 = vstv %s525
    %v527 = vadd.f32 %v378, %v526
    %s528 = scalar_lea.vmem %s0, 24
    %v529 = vld [vmem:[%s528] sm:$0xff]
    %530 = vmatprep.subr.bf16.mxu0 0
    %531 = vmatpush1.bf16.msra.mxu0 %v54
    %532 = vmatprep.subr.bf16.mxu0 0
    %533 = vmatpush1.bf16.msra.mxu0 %v55
    %534 = vmatprep.subr.bf16.mxu0 0
    %535 = vmatpush1.bf16.msra.mxu0 0
    %536 = vmatprep.subr.bf16.mxu0 0
    %537 = vmatpush1.bf16.msra.mxu0 0
    %538 = vmatprep.subr.bf16.mxu0 0
    %539 = vmatpush1.bf16.msra.mxu0 0
    %540 = vmatprep.subr.bf16.mxu0 0
    %541 = vmatpush1.bf16.msra.mxu0 0
    %542 = vmatprep.subr.bf16.mxu0 0
    %543 = vmatpush1.bf16.msra.mxu0 0
    %544 = vmatprep.subr.bf16.mxu0 0
    %545 = vmatpush1.bf16.msra.mxu0 0
    %546 = vmatprep.subr.bf16.mxu0 0
    %547 = vmatpush1.bf16.msra.mxu0 0
    %548 = vmatprep.subr.bf16.mxu0 0
    %549 = vmatpush1.bf16.msra.mxu0 0
    %550 = vmatprep.subr.bf16.mxu0 0
    %551 = vmatpush1.bf16.msra.mxu0 0
    %552 = vmatprep.subr.bf16.mxu0 0
    %553 = vmatpush1.bf16.msra.mxu0 0
    %554 = vmatprep.subr.bf16.mxu0 0
    %555 = vmatpush1.bf16.msra.mxu0 0
    %556 = vmatprep.subr.bf16.mxu0 0
    %557 = vmatpush1.bf16.msra.mxu0 0
    %558 = vmatprep.subr.bf16.mxu0 0
    %559 = vmatpush1.bf16.msra.mxu0 0
    %560 = vmatprep.subr.bf16.mxu0 0
    %561 = vmatpush1.bf16.msra.mxu0 0
    %562 = vmatprep.mubr.bf16.mxu0 0
    %563 = vmatmul.mubr.bf16.gmra.mrb[0].mxu0 %v451
    %v564 = vpop.f32.mrb[0].mxu0
    %v565 = vadd.f32 0.0, %v564
    %v566 = vpop.f32.mrb[0].mxu0
    %v567 = vpop.f32.mrb[0].mxu0
    %v568 = vpop.f32.mrb[0].mxu0
    %569 = vdwg.mxu0
    %v570 = vadd.f32 %v529, %v565
    %v571 = vxor.u32 %v570, 2147483648
    %v572 = vmul.f32 %v571, 1.442695
    %v573 = vpow.pop %v572
    %v574 = vadd.f32 %v573, 1.0
    %v575 = vrcp.pop %v574
    %v576 = vmul.f32 1.0, %v575
    %v577 = vtanh.pop %v570
    %v578 = vmul.f32 %v576, %v439
    %580 = vrot.lane.b32.xlu0 %v577, 64
    %v581 = vpop.permute.xlu0 %580
    %v583 = vmul.f32 %v576, %v581
    %585 = vrot.lane.b32.xlu0 %v583, 32
    %v586 = vpop.permute.xlu0 %585
    %v588 = vadd.f32 %v578, %v586
    %v589 = vtanh.pop %v588
    %591 = vrot.lane.b32.xlu0 %v589, 64
    %v592 = vpop.permute.xlu0 %591
    %v594 = vmul.f32 %v576, %v592
    %v595 = vpack.c.bf16 %v594, %v594
    %597 = vrot.lane.b32.xlu0 %v595, 32
    %v598 = vpop.permute.xlu0 %597
    %v600 = vsel %vm58, %v598, 0
    %602 = vmatprep.subr.bf16.mxu0 0
    %603 = vmatpush1.bf16.msra.mxu0 %v149
    %604 = vmatprep.subr.bf16.mxu0 0
    %605 = vmatpush1.bf16.msra.mxu0 %v150
    %606 = vmatprep.subr.bf16.mxu0 0
    %607 = vmatpush1.bf16.msra.mxu0 0
    %608 = vmatprep.subr.bf16.mxu0 0
    %609 = vmatpush1.bf16.msra.mxu0 0
    %610 = vmatprep.subr.bf16.mxu0 0
    %611 = vmatpush1.bf16.msra.mxu0 0
    %612 = vmatprep.subr.bf16.mxu0 0
    %613 = vmatpush1.bf16.msra.mxu0 0
    %614 = vmatprep.subr.bf16.mxu0 0
    %615 = vmatpush1.bf16.msra.mxu0 0
    %616 = vmatprep.subr.bf16.mxu0 0
    %617 = vmatpush1.bf16.msra.mxu0 0
    %618 = vmatprep.subr.bf16.mxu0 0
    %619 = vmatpush1.bf16.msra.mxu0 0
    %620 = vmatprep.subr.bf16.mxu0 0
    %621 = vmatpush1.bf16.msra.mxu0 0
    %622 = vmatprep.subr.bf16.mxu0 0
    %623 = vmatpush1.bf16.msra.mxu0 0
    %624 = vmatprep.subr.bf16.mxu0 0
    %625 = vmatpush1.bf16.msra.mxu0 0
    %626 = vmatprep.subr.bf16.mxu0 0
    %627 = vmatpush1.bf16.msra.mxu0 0
    %628 = vmatprep.subr.bf16.mxu0 0
    %629 = vmatpush1.bf16.msra.mxu0 0
    %630 = vmatprep.subr.bf16.mxu0 0
    %631 = vmatpush1.bf16.msra.mxu0 0
    %632 = vmatprep.subr.bf16.mxu0 0
    %633 = vmatpush1.bf16.msra.mxu0 0
    %634 = vmatprep.mubr.bf16.mxu0 0
    %635 = vmatmul.mubr.bf16.gmra.mrb[0].mxu0 %v600
    %v636 = vpop.f32.mrb[0].mxu0
    %v637 = vadd.f32 %v136, %v636
    %v638 = vpop.f32.mrb[0].mxu0
    %v639 = vpop.f32.mrb[0].mxu0
    %v640 = vpop.f32.mrb[0].mxu0
    %641 = vdwg.mxu0
    %642 = vmax.xlane.f32.xlu0 %v637
    %v643 = vpop.xlane.xlu0 %642
    %v644 = vsub.f32 %v637, %v643
    %v645 = vmul.f32 %v644, 1.442695
    %v646 = vpow.pop %v645
    %647 = vadd.xlane.f32.xlu0 %v646
    %v648 = vpop.xlane.xlu0 %647
    %v649 = vlog2.pop %v648
    %v650 = vmul.f32 %v649, 0.6931472
    %v651 = vadd.f32 %v643, %v650
    %s652 = scalar_lea.vmem %s1, 24
    %v653 = vld [vmem:[%s652] sm:$0xff]
    %654 = vset.pattern.permute.xlu0 0
    %655 = vperm.xlu0 %654, %v653
    %v656 = vpop.permute.xlu0 %655
    %vm657 = vcmp.eq.s32.totalorder %v41, %v656
    %v658 = vsel %vm657, %v637, 0.0
    %659 = vadd.xlane.f32.xlu0 %v658
    %v660 = vpop.xlane.xlu0 %659
    %v661 = vsub.f32 %v651, %v660
    %s662 = scalar_lea.vmem %s2, 24
    %v663 = vld [vmem:[%s662] sm:$0xff]
    %v664 = vmul.f32 %v661, %v663
    %v665 = vsel %vm217, %v664, 0.0
    %666 = vadd.xlane.f32.xlu0 %v665
    %v667 = vpop.xlane.xlu0 %666
    %v668 = vrot.slane %v667, 4
    %v669 = vadd.f32 %v667, %v668
    %v670 = vrot.slane %v669, 2
    %v671 = vadd.f32 %v669, %v670
    %v672 = vrot.slane %v671, 1
    %v673 = vadd.f32 %v671, %v672
    %s674 = vtos %v673
    %v675 = vstv %s674
    %v676 = vadd.f32 %v527, %v675
    %s677 = scalar_lea.vmem %s0, 32
    %v678 = vld [vmem:[%s677] sm:$0xff]
    %679 = vmatprep.subr.bf16.mxu0 0
    %680 = vmatpush1.bf16.msra.mxu0 %v54
    %681 = vmatprep.subr.bf16.mxu0 0
    %682 = vmatpush1.bf16.msra.mxu0 %v55
    %683 = vmatprep.subr.bf16.mxu0 0
    %684 = vmatpush1.bf16.msra.mxu0 0
    %685 = vmatprep.subr.bf16.mxu0 0
    %686 = vmatpush1.bf16.msra.mxu0 0
    %687 = vmatprep.subr.bf16.mxu0 0
    %688 = vmatpush1.bf16.msra.mxu0 0
    %689 = vmatprep.subr.bf16.mxu0 0
    %690 = vmatpush1.bf16.msra.mxu0 0
    %691 = vmatprep.subr.bf16.mxu0 0
    %692 = vmatpush1.bf16.msra.mxu0 0
    %693 = vmatprep.subr.bf16.mxu0 0
    %694 = vmatpush1.bf16.msra.mxu0 0
    %695 = vmatprep.subr.bf16.mxu0 0
    %696 = vmatpush1.bf16.msra.mxu0 0
    %697 = vmatprep.subr.bf16.mxu0 0
    %698 = vmatpush1.bf16.msra.mxu0 0
    %699 = vmatprep.subr.bf16.mxu0 0
    %700 = vmatpush1.bf16.msra.mxu0 0
    %701 = vmatprep.subr.bf16.mxu0 0
    %702 = vmatpush1.bf16.msra.mxu0 0
    %703 = vmatprep.subr.bf16.mxu0 0
    %704 = vmatpush1.bf16.msra.mxu0 0
    %705 = vmatprep.subr.bf16.mxu0 0
    %706 = vmatpush1.bf16.msra.mxu0 0
    %707 = vmatprep.subr.bf16.mxu0 0
    %708 = vmatpush1.bf16.msra.mxu0 0
    %709 = vmatprep.subr.bf16.mxu0 0
    %710 = vmatpush1.bf16.msra.mxu0 0
    %711 = vmatprep.mubr.bf16.mxu0 0
    %712 = vmatmul.mubr.bf16.gmra.mrb[0].mxu0 %v600
    %v713 = vpop.f32.mrb[0].mxu0
    %v714 = vadd.f32 0.0, %v713
    %v715 = vpop.f32.mrb[0].mxu0
    %v716 = vpop.f32.mrb[0].mxu0
    %v717 = vpop.f32.mrb[0].mxu0
    %718 = vdwg.mxu0
    %v719 = vadd.f32 %v678, %v714
    %v720 = vxor.u32 %v719, 2147483648
    %v721 = vmul.f32 %v720, 1.442695
    %v722 = vpow.pop %v721
    %v723 = vadd.f32 %v722, 1.0
    %v724 = vrcp.pop %v723
    %v725 = vmul.f32 1.0, %v724
    %v726 = vtanh.pop %v719
    %v727 = vmul.f32 %v725, %v588
    %729 = vrot.lane.b32.xlu0 %v726, 64
    %v730 = vpop.permute.xlu0 %729
    %v732 = vmul.f32 %v725, %v730
    %734 = vrot.lane.b32.xlu0 %v732, 32
    %v735 = vpop.permute.xlu0 %734
    %v737 = vadd.f32 %v727, %v735
    %v738 = vtanh.pop %v737
    %740 = vrot.lane.b32.xlu0 %v738, 64
    %v741 = vpop.permute.xlu0 %740
    %v743 = vmul.f32 %v725, %v741
    %v744 = vpack.c.bf16 %v743, %v743
    %746 = vrot.lane.b32.xlu0 %v744, 32
    %v747 = vpop.permute.xlu0 %746
    %v749 = vsel %vm58, %v747, 0
    %751 = vmatprep.subr.bf16.mxu0 0
    %752 = vmatpush1.bf16.msra.mxu0 %v149
    %753 = vmatprep.subr.bf16.mxu0 0
    %754 = vmatpush1.bf16.msra.mxu0 %v150
    %755 = vmatprep.subr.bf16.mxu0 0
    %756 = vmatpush1.bf16.msra.mxu0 0
    %757 = vmatprep.subr.bf16.mxu0 0
    %758 = vmatpush1.bf16.msra.mxu0 0
    %759 = vmatprep.subr.bf16.mxu0 0
    %760 = vmatpush1.bf16.msra.mxu0 0
    %761 = vmatprep.subr.bf16.mxu0 0
    %762 = vmatpush1.bf16.msra.mxu0 0
    %763 = vmatprep.subr.bf16.mxu0 0
    %764 = vmatpush1.bf16.msra.mxu0 0
    %765 = vmatprep.subr.bf16.mxu0 0
    %766 = vmatpush1.bf16.msra.mxu0 0
    %767 = vmatprep.subr.bf16.mxu0 0
    %768 = vmatpush1.bf16.msra.mxu0 0
    %769 = vmatprep.subr.bf16.mxu0 0
    %770 = vmatpush1.bf16.msra.mxu0 0
    %771 = vmatprep.subr.bf16.mxu0 0
    %772 = vmatpush1.bf16.msra.mxu0 0
    %773 = vmatprep.subr.bf16.mxu0 0
    %774 = vmatpush1.bf16.msra.mxu0 0
    %775 = vmatprep.subr.bf16.mxu0 0
    %776 = vmatpush1.bf16.msra.mxu0 0
    %777 = vmatprep.subr.bf16.mxu0 0
    %778 = vmatpush1.bf16.msra.mxu0 0
    %779 = vmatprep.subr.bf16.mxu0 0
    %780 = vmatpush1.bf16.msra.mxu0 0
    %781 = vmatprep.subr.bf16.mxu0 0
    %782 = vmatpush1.bf16.msra.mxu0 0
    %783 = vmatprep.mubr.bf16.mxu0 0
    %784 = vmatmul.mubr.bf16.gmra.mrb[0].mxu0 %v749
    %v785 = vpop.f32.mrb[0].mxu0
    %v786 = vadd.f32 %v136, %v785
    %v787 = vpop.f32.mrb[0].mxu0
    %v788 = vpop.f32.mrb[0].mxu0
    %v789 = vpop.f32.mrb[0].mxu0
    %790 = vdwg.mxu0
    %791 = vmax.xlane.f32.xlu0 %v786
    %v792 = vpop.xlane.xlu0 %791
    %v793 = vsub.f32 %v786, %v792
    %v794 = vmul.f32 %v793, 1.442695
    %v795 = vpow.pop %v794
    %796 = vadd.xlane.f32.xlu0 %v795
    %v797 = vpop.xlane.xlu0 %796
    %v798 = vlog2.pop %v797
    %v799 = vmul.f32 %v798, 0.6931472
    %v800 = vadd.f32 %v792, %v799
    %s801 = scalar_lea.vmem %s1, 32
    %v802 = vld [vmem:[%s801] sm:$0xff]
    %803 = vset.pattern.permute.xlu0 0
    %804 = vperm.xlu0 %803, %v802
    %v805 = vpop.permute.xlu0 %804
    %vm806 = vcmp.eq.s32.totalorder %v41, %v805
    %v807 = vsel %vm806, %v786, 0.0
    %808 = vadd.xlane.f32.xlu0 %v807
    %v809 = vpop.xlane.xlu0 %808
    %v810 = vsub.f32 %v800, %v809
    %s811 = scalar_lea.vmem %s2, 32
    %v812 = vld [vmem:[%s811] sm:$0xff]
    %v813 = vmul.f32 %v810, %v812
    %v814 = vsel %vm217, %v813, 0.0
    %815 = vadd.xlane.f32.xlu0 %v814
    %v816 = vpop.xlane.xlu0 %815
    %v817 = vrot.slane %v816, 4
    %v818 = vadd.f32 %v816, %v817
    %v819 = vrot.slane %v818, 2
    %v820 = vadd.f32 %v818, %v819
    %v821 = vrot.slane %v820, 1
    %v822 = vadd.f32 %v820, %v821
    %s823 = vtos %v822
    %v824 = vstv %s823
    %v825 = vadd.f32 %v676, %v824
    %s826 = scalar_lea.vmem %s0, 40
    %v827 = vld [vmem:[%s826] sm:$0xff]
    %828 = vmatprep.subr.bf16.mxu0 0
    %829 = vmatpush1.bf16.msra.mxu0 %v54
    %830 = vmatprep.subr.bf16.mxu0 0
    %831 = vmatpush1.bf16.msra.mxu0 %v55
    %832 = vmatprep.subr.bf16.mxu0 0
    %833 = vmatpush1.bf16.msra.mxu0 0
    %834 = vmatprep.subr.bf16.mxu0 0
    %835 = vmatpush1.bf16.msra.mxu0 0
    %836 = vmatprep.subr.bf16.mxu0 0
    %837 = vmatpush1.bf16.msra.mxu0 0
    %838 = vmatprep.subr.bf16.mxu0 0
    %839 = vmatpush1.bf16.msra.mxu0 0
    %840 = vmatprep.subr.bf16.mxu0 0
    %841 = vmatpush1.bf16.msra.mxu0 0
    %842 = vmatprep.subr.bf16.mxu0 0
    %843 = vmatpush1.bf16.msra.mxu0 0
    %844 = vmatprep.subr.bf16.mxu0 0
    %845 = vmatpush1.bf16.msra.mxu0 0
    %846 = vmatprep.subr.bf16.mxu0 0
    %847 = vmatpush1.bf16.msra.mxu0 0
    %848 = vmatprep.subr.bf16.mxu0 0
    %849 = vmatpush1.bf16.msra.mxu0 0
    %850 = vmatprep.subr.bf16.mxu0 0
    %851 = vmatpush1.bf16.msra.mxu0 0
    %852 = vmatprep.subr.bf16.mxu0 0
    %853 = vmatpush1.bf16.msra.mxu0 0
    %854 = vmatprep.subr.bf16.mxu0 0
    %855 = vmatpush1.bf16.msra.mxu0 0
    %856 = vmatprep.subr.bf16.mxu0 0
    %857 = vmatpush1.bf16.msra.mxu0 0
    %858 = vmatprep.subr.bf16.mxu0 0
    %859 = vmatpush1.bf16.msra.mxu0 0
    %860 = vmatprep.mubr.bf16.mxu0 0
    %861 = vmatmul.mubr.bf16.gmra.mrb[0].mxu0 %v749
    %v862 = vpop.f32.mrb[0].mxu0
    %v863 = vadd.f32 0.0, %v862
    %v864 = vpop.f32.mrb[0].mxu0
    %v865 = vpop.f32.mrb[0].mxu0
    %v866 = vpop.f32.mrb[0].mxu0
    %867 = vdwg.mxu0
    %v868 = vadd.f32 %v827, %v863
    %v869 = vxor.u32 %v868, 2147483648
    %v870 = vmul.f32 %v869, 1.442695
    %v871 = vpow.pop %v870
    %v872 = vadd.f32 %v871, 1.0
    %v873 = vrcp.pop %v872
    %v874 = vmul.f32 1.0, %v873
    %v875 = vtanh.pop %v868
    %v876 = vmul.f32 %v874, %v737
    %878 = vrot.lane.b32.xlu0 %v875, 64
    %v879 = vpop.permute.xlu0 %878
    %v881 = vmul.f32 %v874, %v879
    %883 = vrot.lane.b32.xlu0 %v881, 32
    %v884 = vpop.permute.xlu0 %883
    %v886 = vadd.f32 %v876, %v884
    %v887 = vtanh.pop %v886
    %889 = vrot.lane.b32.xlu0 %v887, 64
    %v890 = vpop.permute.xlu0 %889
    %v892 = vmul.f32 %v874, %v890
    %v893 = vpack.c.bf16 %v892, %v892
    %895 = vrot.lane.b32.xlu0 %v893, 32
    %v896 = vpop.permute.xlu0 %895
    %v898 = vsel %vm58, %v896, 0
    %900 = vmatprep.subr.bf16.mxu0 0
    %901 = vmatpush1.bf16.msra.mxu0 %v149
    %902 = vmatprep.subr.bf16.mxu0 0
    %903 = vmatpush1.bf16.msra.mxu0 %v150
    %904 = vmatprep.subr.bf16.mxu0 0
    %905 = vmatpush1.bf16.msra.mxu0 0
    %906 = vmatprep.subr.bf16.mxu0 0
    %907 = vmatpush1.bf16.msra.mxu0 0
    %908 = vmatprep.subr.bf16.mxu0 0
    %909 = vmatpush1.bf16.msra.mxu0 0
    %910 = vmatprep.subr.bf16.mxu0 0
    %911 = vmatpush1.bf16.msra.mxu0 0
    %912 = vmatprep.subr.bf16.mxu0 0
    %913 = vmatpush1.bf16.msra.mxu0 0
    %914 = vmatprep.subr.bf16.mxu0 0
    %915 = vmatpush1.bf16.msra.mxu0 0
    %916 = vmatprep.subr.bf16.mxu0 0
    %917 = vmatpush1.bf16.msra.mxu0 0
    %918 = vmatprep.subr.bf16.mxu0 0
    %919 = vmatpush1.bf16.msra.mxu0 0
    %920 = vmatprep.subr.bf16.mxu0 0
    %921 = vmatpush1.bf16.msra.mxu0 0
    %922 = vmatprep.subr.bf16.mxu0 0
    %923 = vmatpush1.bf16.msra.mxu0 0
    %924 = vmatprep.subr.bf16.mxu0 0
    %925 = vmatpush1.bf16.msra.mxu0 0
    %926 = vmatprep.subr.bf16.mxu0 0
    %927 = vmatpush1.bf16.msra.mxu0 0
    %928 = vmatprep.subr.bf16.mxu0 0
    %929 = vmatpush1.bf16.msra.mxu0 0
    %930 = vmatprep.subr.bf16.mxu0 0
    %931 = vmatpush1.bf16.msra.mxu0 0
    %932 = vmatprep.mubr.bf16.mxu0 0
    %933 = vmatmul.mubr.bf16.gmra.mrb[0].mxu0 %v898
    %v934 = vpop.f32.mrb[0].mxu0
    %v935 = vadd.f32 %v136, %v934
    %v936 = vpop.f32.mrb[0].mxu0
    %v937 = vpop.f32.mrb[0].mxu0
    %v938 = vpop.f32.mrb[0].mxu0
    %939 = vdwg.mxu0
    %940 = vmax.xlane.f32.xlu0 %v935
    %v941 = vpop.xlane.xlu0 %940
    %v942 = vsub.f32 %v935, %v941
    %v943 = vmul.f32 %v942, 1.442695
    %v944 = vpow.pop %v943
    %945 = vadd.xlane.f32.xlu0 %v944
    %v946 = vpop.xlane.xlu0 %945
    %v947 = vlog2.pop %v946
    %v948 = vmul.f32 %v947, 0.6931472
    %v949 = vadd.f32 %v941, %v948
    %s950 = scalar_lea.vmem %s1, 40
    %v951 = vld [vmem:[%s950] sm:$0xff]
    %952 = vset.pattern.permute.xlu0 0
    %953 = vperm.xlu0 %952, %v951
    %v954 = vpop.permute.xlu0 %953
    %vm955 = vcmp.eq.s32.totalorder %v41, %v954
    %v956 = vsel %vm955, %v935, 0.0
    %957 = vadd.xlane.f32.xlu0 %v956
    %v958 = vpop.xlane.xlu0 %957
    %v959 = vsub.f32 %v949, %v958
    %s960 = scalar_lea.vmem %s2, 40
    %v961 = vld [vmem:[%s960] sm:$0xff]
    %v962 = vmul.f32 %v959, %v961
    %v963 = vsel %vm217, %v962, 0.0
    %964 = vadd.xlane.f32.xlu0 %v963
    %v965 = vpop.xlane.xlu0 %964
    %v966 = vrot.slane %v965, 4
    %v967 = vadd.f32 %v965, %v966
    %v968 = vrot.slane %v967, 2
    %v969 = vadd.f32 %v967, %v968
    %v970 = vrot.slane %v969, 1
    %v971 = vadd.f32 %v969, %v970
    %s972 = vtos %v971
    %v973 = vstv %s972
    %v974 = vadd.f32 %v825, %v973
    %s975 = scalar_lea.vmem %s0, 48
    %v976 = vld [vmem:[%s975] sm:$0xff]
    %977 = vmatprep.subr.bf16.mxu0 0
    %978 = vmatpush1.bf16.msra.mxu0 %v54
    %979 = vmatprep.subr.bf16.mxu0 0
    %980 = vmatpush1.bf16.msra.mxu0 %v55
    %981 = vmatprep.subr.bf16.mxu0 0
    %982 = vmatpush1.bf16.msra.mxu0 0
    %983 = vmatprep.subr.bf16.mxu0 0
    %984 = vmatpush1.bf16.msra.mxu0 0
    %985 = vmatprep.subr.bf16.mxu0 0
    %986 = vmatpush1.bf16.msra.mxu0 0
    %987 = vmatprep.subr.bf16.mxu0 0
    %988 = vmatpush1.bf16.msra.mxu0 0
    %989 = vmatprep.subr.bf16.mxu0 0
    %990 = vmatpush1.bf16.msra.mxu0 0
    %991 = vmatprep.subr.bf16.mxu0 0
    %992 = vmatpush1.bf16.msra.mxu0 0
    %993 = vmatprep.subr.bf16.mxu0 0
    %994 = vmatpush1.bf16.msra.mxu0 0
    %995 = vmatprep.subr.bf16.mxu0 0
    %996 = vmatpush1.bf16.msra.mxu0 0
    %997 = vmatprep.subr.bf16.mxu0 0
    %998 = vmatpush1.bf16.msra.mxu0 0
    %999 = vmatprep.subr.bf16.mxu0 0
    %1000 = vmatpush1.bf16.msra.mxu0 0
    %1001 = vmatprep.subr.bf16.mxu0 0
    %1002 = vmatpush1.bf16.msra.mxu0 0
    %1003 = vmatprep.subr.bf16.mxu0 0
    %1004 = vmatpush1.bf16.msra.mxu0 0
    %1005 = vmatprep.subr.bf16.mxu0 0
    %1006 = vmatpush1.bf16.msra.mxu0 0
    %1007 = vmatprep.subr.bf16.mxu0 0
    %1008 = vmatpush1.bf16.msra.mxu0 0
    %1009 = vmatprep.mubr.bf16.mxu0 0
    %1010 = vmatmul.mubr.bf16.gmra.mrb[0].mxu0 %v898
    %v1011 = vpop.f32.mrb[0].mxu0
    %v1012 = vadd.f32 0.0, %v1011
    %v1013 = vpop.f32.mrb[0].mxu0
    %v1014 = vpop.f32.mrb[0].mxu0
    %v1015 = vpop.f32.mrb[0].mxu0
    %1016 = vdwg.mxu0
    %v1017 = vadd.f32 %v976, %v1012
    %v1018 = vxor.u32 %v1017, 2147483648
    %v1019 = vmul.f32 %v1018, 1.442695
    %v1020 = vpow.pop %v1019
    %v1021 = vadd.f32 %v1020, 1.0
    %v1022 = vrcp.pop %v1021
    %v1023 = vmul.f32 1.0, %v1022
    %v1024 = vtanh.pop %v1017
    %v1025 = vmul.f32 %v1023, %v886
    %1027 = vrot.lane.b32.xlu0 %v1024, 64
    %v1028 = vpop.permute.xlu0 %1027
    %v1030 = vmul.f32 %v1023, %v1028
    %1032 = vrot.lane.b32.xlu0 %v1030, 32
    %v1033 = vpop.permute.xlu0 %1032
    %v1035 = vadd.f32 %v1025, %v1033
    %v1036 = vtanh.pop %v1035
    %1038 = vrot.lane.b32.xlu0 %v1036, 64
    %v1039 = vpop.permute.xlu0 %1038
    %v1041 = vmul.f32 %v1023, %v1039
    %v1042 = vpack.c.bf16 %v1041, %v1041
    %1044 = vrot.lane.b32.xlu0 %v1042, 32
    %v1045 = vpop.permute.xlu0 %1044
    %v1047 = vsel %vm58, %v1045, 0
    %1049 = vmatprep.subr.bf16.mxu0 0
    %1050 = vmatpush1.bf16.msra.mxu0 %v149
    %1051 = vmatprep.subr.bf16.mxu0 0
    %1052 = vmatpush1.bf16.msra.mxu0 %v150
    %1053 = vmatprep.subr.bf16.mxu0 0
    %1054 = vmatpush1.bf16.msra.mxu0 0
    %1055 = vmatprep.subr.bf16.mxu0 0
    %1056 = vmatpush1.bf16.msra.mxu0 0
    %1057 = vmatprep.subr.bf16.mxu0 0
    %1058 = vmatpush1.bf16.msra.mxu0 0
    %1059 = vmatprep.subr.bf16.mxu0 0
    %1060 = vmatpush1.bf16.msra.mxu0 0
    %1061 = vmatprep.subr.bf16.mxu0 0
    %1062 = vmatpush1.bf16.msra.mxu0 0
    %1063 = vmatprep.subr.bf16.mxu0 0
    %1064 = vmatpush1.bf16.msra.mxu0 0
    %1065 = vmatprep.subr.bf16.mxu0 0
    %1066 = vmatpush1.bf16.msra.mxu0 0
    %1067 = vmatprep.subr.bf16.mxu0 0
    %1068 = vmatpush1.bf16.msra.mxu0 0
    %1069 = vmatprep.subr.bf16.mxu0 0
    %1070 = vmatpush1.bf16.msra.mxu0 0
    %1071 = vmatprep.subr.bf16.mxu0 0
    %1072 = vmatpush1.bf16.msra.mxu0 0
    %1073 = vmatprep.subr.bf16.mxu0 0
    %1074 = vmatpush1.bf16.msra.mxu0 0
    %1075 = vmatprep.subr.bf16.mxu0 0
    %1076 = vmatpush1.bf16.msra.mxu0 0
    %1077 = vmatprep.subr.bf16.mxu0 0
    %1078 = vmatpush1.bf16.msra.mxu0 0
    %1079 = vmatprep.subr.bf16.mxu0 0
    %1080 = vmatpush1.bf16.msra.mxu0 0
    %1081 = vmatprep.mubr.bf16.mxu0 0
    %1082 = vmatmul.mubr.bf16.gmra.mrb[0].mxu0 %v1047
    %v1083 = vpop.f32.mrb[0].mxu0
    %v1084 = vadd.f32 %v136, %v1083
    %v1085 = vpop.f32.mrb[0].mxu0
    %v1086 = vpop.f32.mrb[0].mxu0
    %v1087 = vpop.f32.mrb[0].mxu0
    %1088 = vdwg.mxu0
    %1089 = vmax.xlane.f32.xlu0 %v1084
    %v1090 = vpop.xlane.xlu0 %1089
    %v1091 = vsub.f32 %v1084, %v1090
    %v1092 = vmul.f32 %v1091, 1.442695
    %v1093 = vpow.pop %v1092
    %1094 = vadd.xlane.f32.xlu0 %v1093
    %v1095 = vpop.xlane.xlu0 %1094
    %v1096 = vlog2.pop %v1095
    %v1097 = vmul.f32 %v1096, 0.6931472
    %v1098 = vadd.f32 %v1090, %v1097
    %s1099 = scalar_lea.vmem %s1, 48
    %v1100 = vld [vmem:[%s1099] sm:$0xff]
    %1101 = vset.pattern.permute.xlu0 0
    %1102 = vperm.xlu0 %1101, %v1100
    %v1103 = vpop.permute.xlu0 %1102
    %vm1104 = vcmp.eq.s32.totalorder %v41, %v1103
    %v1105 = vsel %vm1104, %v1084, 0.0
    %1106 = vadd.xlane.f32.xlu0 %v1105
    %v1107 = vpop.xlane.xlu0 %1106
    %v1108 = vsub.f32 %v1098, %v1107
    %s1109 = scalar_lea.vmem %s2, 48
    %v1110 = vld [vmem:[%s1109] sm:$0xff]
    %v1111 = vmul.f32 %v1108, %v1110
    %v1112 = vsel %vm217, %v1111, 0.0
    %1113 = vadd.xlane.f32.xlu0 %v1112
    %v1114 = vpop.xlane.xlu0 %1113
    %v1115 = vrot.slane %v1114, 4
    %v1116 = vadd.f32 %v1114, %v1115
    %v1117 = vrot.slane %v1116, 2
    %v1118 = vadd.f32 %v1116, %v1117
    %v1119 = vrot.slane %v1118, 1
    %v1120 = vadd.f32 %v1118, %v1119
    %s1121 = vtos %v1120
    %v1122 = vstv %s1121
    %v1123 = vadd.f32 %v974, %v1122
    %s1124 = scalar_lea.vmem %s0, 56
    %v1125 = vld [vmem:[%s1124] sm:$0xff]
    %1126 = vmatprep.subr.bf16.mxu0 0
    %1127 = vmatpush1.bf16.msra.mxu0 %v54
    %1128 = vmatprep.subr.bf16.mxu0 0
    %1129 = vmatpush1.bf16.msra.mxu0 %v55
    %1130 = vmatprep.subr.bf16.mxu0 0
    %1131 = vmatpush1.bf16.msra.mxu0 0
    %1132 = vmatprep.subr.bf16.mxu0 0
    %1133 = vmatpush1.bf16.msra.mxu0 0
    %1134 = vmatprep.subr.bf16.mxu0 0
    %1135 = vmatpush1.bf16.msra.mxu0 0
    %1136 = vmatprep.subr.bf16.mxu0 0
    %1137 = vmatpush1.bf16.msra.mxu0 0
    %1138 = vmatprep.subr.bf16.mxu0 0
    %1139 = vmatpush1.bf16.msra.mxu0 0
    %1140 = vmatprep.subr.bf16.mxu0 0
    %1141 = vmatpush1.bf16.msra.mxu0 0
    %1142 = vmatprep.subr.bf16.mxu0 0
    %1143 = vmatpush1.bf16.msra.mxu0 0
    %1144 = vmatprep.subr.bf16.mxu0 0
    %1145 = vmatpush1.bf16.msra.mxu0 0
    %1146 = vmatprep.subr.bf16.mxu0 0
    %1147 = vmatpush1.bf16.msra.mxu0 0
    %1148 = vmatprep.subr.bf16.mxu0 0
    %1149 = vmatpush1.bf16.msra.mxu0 0
    %1150 = vmatprep.subr.bf16.mxu0 0
    %1151 = vmatpush1.bf16.msra.mxu0 0
    %1152 = vmatprep.subr.bf16.mxu0 0
    %1153 = vmatpush1.bf16.msra.mxu0 0
    %1154 = vmatprep.subr.bf16.mxu0 0
    %1155 = vmatpush1.bf16.msra.mxu0 0
    %1156 = vmatprep.subr.bf16.mxu0 0
    %1157 = vmatpush1.bf16.msra.mxu0 0
    %1158 = vmatprep.mubr.bf16.mxu0 0
    %1159 = vmatmul.mubr.bf16.gmra.mrb[0].mxu0 %v1047
    %v1160 = vpop.f32.mrb[0].mxu0
    %v1161 = vadd.f32 0.0, %v1160
    %v1162 = vpop.f32.mrb[0].mxu0
    %v1163 = vpop.f32.mrb[0].mxu0
    %v1164 = vpop.f32.mrb[0].mxu0
    %1165 = vdwg.mxu0
    %v1166 = vadd.f32 %v1125, %v1161
    %v1167 = vxor.u32 %v1166, 2147483648
    %v1168 = vmul.f32 %v1167, 1.442695
    %v1169 = vpow.pop %v1168
    %v1170 = vadd.f32 %v1169, 1.0
    %v1171 = vrcp.pop %v1170
    %v1172 = vmul.f32 1.0, %v1171
    %v1173 = vtanh.pop %v1166
    %v1174 = vmul.f32 %v1172, %v1035
    %1176 = vrot.lane.b32.xlu0 %v1173, 64
    %v1177 = vpop.permute.xlu0 %1176
    %v1179 = vmul.f32 %v1172, %v1177
    %1181 = vrot.lane.b32.xlu0 %v1179, 32
    %v1182 = vpop.permute.xlu0 %1181
    %v1184 = vadd.f32 %v1174, %v1182
    %v1185 = vtanh.pop %v1184
    %1187 = vrot.lane.b32.xlu0 %v1185, 64
    %v1188 = vpop.permute.xlu0 %1187
    %v1190 = vmul.f32 %v1172, %v1188
    %v1191 = vpack.c.bf16 %v1190, %v1190
    %1193 = vrot.lane.b32.xlu0 %v1191, 32
    %v1194 = vpop.permute.xlu0 %1193
    %v1196 = vsel %vm58, %v1194, 0
    %1198 = vmatprep.subr.bf16.mxu0 0
    %1199 = vmatpush1.bf16.msra.mxu0 %v149
    %1200 = vmatprep.subr.bf16.mxu0 0
    %1201 = vmatpush1.bf16.msra.mxu0 %v150
    %1202 = vmatprep.subr.bf16.mxu0 0
    %1203 = vmatpush1.bf16.msra.mxu0 0
    %1204 = vmatprep.subr.bf16.mxu0 0
    %1205 = vmatpush1.bf16.msra.mxu0 0
    %1206 = vmatprep.subr.bf16.mxu0 0
    %1207 = vmatpush1.bf16.msra.mxu0 0
    %1208 = vmatprep.subr.bf16.mxu0 0
    %1209 = vmatpush1.bf16.msra.mxu0 0
    %1210 = vmatprep.subr.bf16.mxu0 0
    %1211 = vmatpush1.bf16.msra.mxu0 0
    %1212 = vmatprep.subr.bf16.mxu0 0
    %1213 = vmatpush1.bf16.msra.mxu0 0
    %1214 = vmatprep.subr.bf16.mxu0 0
    %1215 = vmatpush1.bf16.msra.mxu0 0
    %1216 = vmatprep.subr.bf16.mxu0 0
    %1217 = vmatpush1.bf16.msra.mxu0 0
    %1218 = vmatprep.subr.bf16.mxu0 0
    %1219 = vmatpush1.bf16.msra.mxu0 0
    %1220 = vmatprep.subr.bf16.mxu0 0
    %1221 = vmatpush1.bf16.msra.mxu0 0
    %1222 = vmatprep.subr.bf16.mxu0 0
    %1223 = vmatpush1.bf16.msra.mxu0 0
    %1224 = vmatprep.subr.bf16.mxu0 0
    %1225 = vmatpush1.bf16.msra.mxu0 0
    %1226 = vmatprep.subr.bf16.mxu0 0
    %1227 = vmatpush1.bf16.msra.mxu0 0
    %1228 = vmatprep.subr.bf16.mxu0 0
    %1229 = vmatpush1.bf16.msra.mxu0 0
    %1230 = vmatprep.mubr.bf16.mxu0 0
    %1231 = vmatmul.mubr.bf16.gmra.mrb[0].mxu0 %v1196
    %v1232 = vpop.f32.mrb[0].mxu0
    %v1233 = vadd.f32 %v136, %v1232
    %v1234 = vpop.f32.mrb[0].mxu0
    %v1235 = vpop.f32.mrb[0].mxu0
    %v1236 = vpop.f32.mrb[0].mxu0
    %1237 = vdwg.mxu0
    %1238 = vmax.xlane.f32.xlu0 %v1233
    %v1239 = vpop.xlane.xlu0 %1238
    %v1240 = vsub.f32 %v1233, %v1239
    %v1241 = vmul.f32 %v1240, 1.442695
    %v1242 = vpow.pop %v1241
    %1243 = vadd.xlane.f32.xlu0 %v1242
    %v1244 = vpop.xlane.xlu0 %1243
    %v1245 = vlog2.pop %v1244
    %v1246 = vmul.f32 %v1245, 0.6931472
    %v1247 = vadd.f32 %v1239, %v1246
    %s1248 = scalar_lea.vmem %s1, 56
    %v1249 = vld [vmem:[%s1248] sm:$0xff]
    %1250 = vset.pattern.permute.xlu0 0
    %1251 = vperm.xlu0 %1250, %v1249
    %v1252 = vpop.permute.xlu0 %1251
    %vm1253 = vcmp.eq.s32.totalorder %v41, %v1252
    %v1254 = vsel %vm1253, %v1233, 0.0
    %1255 = vadd.xlane.f32.xlu0 %v1254
    %v1256 = vpop.xlane.xlu0 %1255
    %v1257 = vsub.f32 %v1247, %v1256
    %s1258 = scalar_lea.vmem %s2, 56
    %v1259 = vld [vmem:[%s1258] sm:$0xff]
    %v1260 = vmul.f32 %v1257, %v1259
    %v1261 = vsel %vm217, %v1260, 0.0
    %1262 = vadd.xlane.f32.xlu0 %v1261
    %v1263 = vpop.xlane.xlu0 %1262
    %v1264 = vrot.slane %v1263, 4
    %v1265 = vadd.f32 %v1263, %v1264
    %v1266 = vrot.slane %v1265, 2
    %v1267 = vadd.f32 %v1265, %v1266
    %v1268 = vrot.slane %v1267, 1
    %v1269 = vadd.f32 %v1267, %v1268
    %s1270 = vtos %v1269
    %v1271 = vstv %s1270
    %v1272 = vadd.f32 %v1123, %v1271
    %vm1273 = vcmask 0
    %1274 = vst.msk [vmem:[#allocation2] sm:$0x1] %vm1273, %v1272
    // Predicated region
    $region34: #{lstm_decoder_loss.1} parent=1 // pred_check
      _
    $region35: #{lstm_decoder_loss.1} parent=1 // pred_check_branch
      %1276 = sbr.rel (0) target = $region37
    $region36: #{lstm_decoder_loss.1} parent=1 // pred_region
      %s1278 = ssub.s32 16, 16
      %1279 = vsyncadd [#allocation3], %s1278
      %s1281 = sshll.u32 [#allocation2], 4
      %s1282 = int_to_ptr.vmem [resolvable:$true] %s1281
      %1284 = dma.vmem_to_hbm [thread:$0]  %s1282, 16, %s8, [#allocation3]
    $region37: #{lstm_decoder_loss.1} parent=1 // pred_fallthru
      _
    // Predicated region
    $region38: #{lstm_decoder_loss.1} parent=1 // pred_check
      _
    $region39: #{lstm_decoder_loss.1} parent=1 // pred_check_branch
      %1286 = sbr.rel (0) target = $region41
    $region40: #{lstm_decoder_loss.1} parent=1 // pred_region
      %1287 = dma.done [#allocation3], 16
    $region41: #{lstm_decoder_loss.1} parent=1 // pred_fallthru
      _
    %1288 = vsyncpa [#allocation3], 1

</llo_original>
